<compile_context>
chip_gen: v7x
topology: tpu7x:2x2x1
jax: 0.10.0
libtpu: 0.0.40
codegen_flags: <defaults>
</compile_context>

<pallas_src>
import math
import functools

import numpy as np
import jax
import jax.numpy as jnp
from jax.experimental import pallas as pl
from jax.experimental.pallas import tpu as pltpu

# ---- Multiview hyper-parameters (nn.Module __init__ defaults) ----
P = 1            # |.|**p  (p=1 -> plain abs; pow skipped in that case)
N_THETA = 10     # number of random projection directions
GAMMA = 1.0
ETA = 0.5
NORMALIZE = True # normalize(f)**2 = f**2 / max(sum(f**2), eps**2), eps=1e-12
MARGIN = 0.012
# reduction == torch.sum over dim=1, followed by .mean() over the batch

LANES = 128
TK = 2048        # reduction tile along the flattened feature axis


def _round_up(x, m):
    return (x + m - 1) // m * m


# ----------------------------------------------------------------------------
# Kernel: normalized segment-sums for student & teacher features.
#   row layout of the output: batch-tile i occupies rows [i*2*tb, (i+1)*2*tb);
#   first tb rows are student, next tb rows are teacher.
#   out[row, c] = sum_{lo[c] < j <= hi[c]} F[row, j]**2
#                 / max(sum_j F[row, j]**2, 1e-24)
# Column K of (lo, hi) is an all-ones column, so the squared norm is produced
# by the same MXU matmul (no cross-lane reduce, no extra scratch).
# Grid = (nb batch tiles [parallel], nk reduction steps [arbitrary, last]).
# ----------------------------------------------------------------------------
def segment_masses(fs, ft, lo, hi, *, kp, K, tk, tb, nb):
    B, N = fs.shape
    assert ft.shape == (B, N) and nb * tb == B
    nk = (N + tk - 1) // tk
    ragged = (N % tk) != 0

    def kernel(lo_ref, hi_ref, fs_ref, ft_ref, o_ref, acc_ref):
        k = pl.program_id(1)

        @pl.when(k == 0)
        def _():
            acc_ref[...] = jnp.zeros_like(acc_ref)

        # Interval-indicator tile for this step: built once, shared by the
        # student and teacher halves.  bf16 halves its vreg/VMEM footprint;
        # 0/1 are exact in bf16.
        base = k * tk
        j = jax.lax.broadcasted_iota(jnp.int32, (tk, kp), 0)    # local feat idx
        lo_t = lo_ref[...] - base                               # (1, kp)
        hi_t = hi_ref[...] - base
        m = ((j > lo_t) & (j <= hi_t)).astype(jnp.float32).astype(jnp.bfloat16)

        # One (2*tb, tk) LHS: student rows on top, teacher rows below.
        f_s = fs_ref[...].astype(jnp.float32)
        f_t = ft_ref[...].astype(jnp.float32)
        ff = jnp.concatenate([f_s * f_s, f_t * f_t], axis=0)    # (2*tb, tk)
        if ragged:
            # Zero the out-of-range tail of the last block (no wrapper pad).
            col = base + jax.lax.broadcasted_iota(jnp.int32, (1, tk), 1)
            ff = jnp.where(col < N, ff, 0.0)
        ff = ff.astype(jnp.bfloat16)

        acc_ref[...] += jnp.dot(ff, m, preferred_element_type=jnp.float32)

        @pl.when(k == nk - 1)
        def _():
            if NORMALIZE:
                # Column K is the all-ones column -> per-row sum of squares.
                denom = jnp.maximum(acc_ref[:, K:K + 1], 1e-24)  # F.normalize eps^2
                o_ref[...] = acc_ref[...] * pl.reciprocal(denom, approx=True)
            else:
                o_ref[...] = acc_ref[...]

    return pl.pallas_call(
        kernel,
        out_shape=jax.ShapeDtypeStruct((nb * 2 * tb, kp), jnp.float32),
        grid_spec=pltpu.PrefetchScalarGridSpec(
            num_scalar_prefetch=0,
            grid=(nb, nk),
            in_specs=[pl.BlockSpec((1, kp), lambda i, k: (0, 0)),
                      pl.BlockSpec((1, kp), lambda i, k: (0, 0)),
                      pl.BlockSpec((tb, tk), lambda i, k: (i, k)),
                      pl.BlockSpec((tb, tk), lambda i, k: (i, k))],
            out_specs=pl.BlockSpec((2 * tb, kp), lambda i, k: (i, 0)),
            scratch_shapes=[pltpu.VMEM((2 * tb, kp), jnp.float32)]),
        compiler_params=pltpu.CompilerParams(
            dimension_semantics=("parallel", "arbitrary")),
    )(lo, hi, fs, ft)


# ----------------------------------------------------------------------------
# Device-side loss: one pallas_call + tiny XLA-fused reductions.
# ----------------------------------------------------------------------------
@functools.partial(jax.jit,
                   static_argnames=("kp", "K", "gm1", "tk", "tb", "nb"))
def _mtat_device(f_s, f_t, lo, hi, idx_a, pp1, nn1, pp2, nn2,
                 *, kp, K, gm1, tk, tb, nb):
    B = f_s.shape[0]
    N = int(np.prod(f_s.shape[1:]))
    T = N_THETA

    # Native dtype, no pad, no stack: the kernel handles casting and the
    # ragged tail itself.
    fs = f_s.reshape(B, N)
    ft = f_t.reshape(B, N)

    masses = segment_masses(fs, ft, lo, hi, kp=kp, K=K, tk=tk, tb=tb, nb=nb)
    masses = masses.reshape(nb, 2, tb, kp)[..., :K]             # (nb, 2, tb, K)
    I_s = masses[:, 0].reshape(B, T, gm1).transpose(1, 0, 2)    # (T, B, G-1)
    I_t = masses[:, 1].reshape(B, T, gm1).transpose(1, 0, 2)

    # Contrastive gathers (tiny; fused by XLA under jit).
    A1 = I_s[:, idx_a, :]
    P1 = jnp.take_along_axis(I_t, pp1[:, :, None], axis=1)
    Nn1 = jnp.take_along_axis(I_t, nn1[:, :, None], axis=1)
    A2 = I_t[:, idx_a, :]
    P2 = jnp.take_along_axis(I_s, pp2[:, :, None], axis=1)
    Nn2 = jnp.take_along_axis(I_s, nn2[:, :, None], axis=1)

    def absdiff_sum(x, y):
        d = jnp.abs(x - y)
        if P != 1:                                              # p == 1 -> no pow
            d = d ** P
        return jnp.sum(d, axis=-1)                              # (T, B)

    swd = absdiff_sum(I_s, I_t)
    pos1 = absdiff_sum(A1, P1)
    neg1 = absdiff_sum(A1, Nn1)
    pos2 = absdiff_sum(A2, P2)
    neg2 = absdiff_sum(A2, Nn2)

    per = (GAMMA * swd
           + ETA * (pos1 + jnp.maximum(MARGIN - neg1, 0.0)
                    + pos2 + jnp.maximum(MARGIN - neg2, 0.0)))
    # == mean over theta of [gamma*sum_dim1(|.|^p).mean_B + eta*(CL1 + CL2)]
    return jnp.mean(per)


# ----------------------------------------------------------------------------
# mtat_loss: host glue (projections, sort, searchsorted, pairings) + kernel
# ----------------------------------------------------------------------------
def mtat_loss_pallas(f_s, f_t, labels_np, key, pairing_seed=0):
    B, C_s, H, Wsp = f_s.shape
    C_t = f_t.shape[1]
    assert f_t.shape == f_s.shape, "reference assumes matching student/teacher shapes"
    num_group = math.gcd(C_s, C_t) // 2
    gm1 = num_group - 1
    N = C_s * H * Wsp
    T = N_THETA
    K = T * gm1
    kp = _round_up(K + 1, LANES)          # +1 for the all-ones (row-norm) column

    tk = min(TK, _round_up(N, LANES))     # small maps -> single reduction step
    nb = 2 if (B % 16 == 0) else 1        # parallel batch tiles (v7x 2-TC occupancy)
    tb = B // nb

    # --- random projection directions theta, L2-normalized (glue) ---
    theta = jax.random.normal(key, (T, 3), dtype=jnp.float32)
    theta = theta / jnp.linalg.norm(theta, axis=-1, keepdims=True)

    # --- (c, h, w) index grid, projections, per-theta quantile indices ---
    c, d1, d2 = np.indices((C_s, H, Wsp))
    idx = np.stack([c.ravel(), d1.ravel(), d2.ravel()], axis=1).astype(np.float32)
    pro = (jnp.asarray(idx) @ theta.T).T                        # (T, N)
    val_sort = jnp.sort(pro, axis=1)
    quant = jnp.arange(num_group + 1, dtype=jnp.float32) / num_group
    vq = (val_sort[:, -1:] - val_sort[:, :1]) * quant[None, :] + val_sort[:, :1]
    q_idx = jax.vmap(jnp.searchsorted)(val_sort, vq)[:, 1:-1]   # (T, G-1)
    q_idx = q_idx.astype(jnp.int32)

    # --- per-column interval bounds (lo, hi]; padded columns select nothing;
    #     column K selects everything (ones column -> squared row norm) ---
    hi_full = q_idx.reshape(-1)                                 # (K,)
    lo_full = jnp.concatenate(
        [jnp.full((T, 1), -1, jnp.int32), q_idx[:, :-1]], axis=1).reshape(-1)
    lo = jnp.full((1, kp), -1, jnp.int32).at[0, :K].set(lo_full)
    hi = jnp.full((1, kp), -1, jnp.int32).at[0, :K].set(hi_full)
    hi = hi.at[0, K].set(jnp.int32(2 ** 30))                    # ones column

    # --- contrastive pairings (host numpy, mirrors reference .cpu().numpy()) ---
    rng = np.random.RandomState(pairing_seed)
    target = np.asarray(labels_np).reshape(-1)
    pos = np.where(target > 0)[0]
    neg = np.where(target < 1)[0]
    idx_a = np.concatenate([pos, neg]).astype(np.int32)         # anchors, (B,)

    def one_pairing():
        pp = np.concatenate([rng.permutation(pos), rng.permutation(neg)])
        nn = np.concatenate([rng.choice(neg, size=len(pos)),
                             rng.choice(pos, size=len(neg))])
        return pp.astype(np.int32), nn.astype(np.int32)

    pp1 = np.zeros((T, B), np.int32); nn1 = np.zeros_like(pp1)
    pp2 = np.zeros((T, B), np.int32); nn2 = np.zeros_like(pp1)
    for t in range(T):
        pp1[t], nn1[t] = one_pairing()    # contrastive(i_f_s, i_f_t)
        pp2[t], nn2[t] = one_pairing()    # contrastive(i_f_t, i_f_s)

    return _mtat_device(f_s, f_t, lo, hi,
                        jnp.asarray(idx_a), jnp.asarray(pp1), jnp.asarray(nn1),
                        jnp.asarray(pp2), jnp.asarray(nn2),
                        kp=kp, K=K, gm1=gm1, tk=tk, tb=tb, nb=nb)


def multiview_forward(g_s, g_t, labels_np, weights, key):
    """Returns [mtat_loss(f_s, f_t, labels) * w for w > 0], like Multiview.forward."""
    # Note: layers with identical shapes could be folded into one pallas_call
    # (extra kp columns per layer) to amortize launch overhead; kept per-layer
    # here to avoid an extra HBM stacking copy of the full feature maps.
    losses = []
    keys = jax.random.split(key, len(g_s))
    for i, (f_s, f_t, w) in enumerate(zip(g_s, g_t, weights)):
        if w > 0:
            losses.append(mtat_loss_pallas(f_s, f_t, labels_np, keys[i],
                                           pairing_seed=i) * w)
    return losses


if __name__ == "__main__":
    key = jax.random.PRNGKey(0)
    k1, k2, k3, k4, kf = jax.random.split(key, 5)

    B, C, H, W = 4, 8, 16, 16            # N = C*H*W = 2048, num_group = 4
    g_s = [jax.random.normal(k1, (B, C, H, W), jnp.float32),
           jax.random.normal(k2, (B, C, H, W), jnp.float32)]
    g_t = [jax.random.normal(k3, (B, C, H, W), jnp.float32),
           jax.random.normal(k4, (B, C, H, W), jnp.float32)]
    labels = np.array([[1], [0], [1], [0]], dtype=np.int32)   # B x 1, host-side
    weights = [1.0, 0.5]

    out = multiview_forward(g_s, g_t, labels, weights, kf)
    out = [jax.block_until_ready(x) for x in out]
    assert len(out) == 2 and all(np.isfinite(np.asarray(x)) for x in out)
    print("KERNEL_OK")
</pallas_src>

<mosaic_0001>
module attributes {stable_mosaic.version = 11 : i64} {
  func.func @kernel(%arg0: i32, %arg1: i32, %arg2: memref<1x128xi32, #tpu.memory_space<vmem>>, %arg3: memref<1x128xi32, #tpu.memory_space<vmem>>, %arg4: memref<4x2048xf32, #tpu.memory_space<vmem>>, %arg5: memref<4x2048xf32, #tpu.memory_space<vmem>>, %arg6: memref<8x128xf32, #tpu.memory_space<vmem>>, %arg7: memref<8x128xf32, #tpu.memory_space<vmem>>) attributes {dimension_semantics = [#tpu.dimension_semantics<parallel>, #tpu.dimension_semantics<arbitrary>], iteration_bounds = array<i64: 1, 1>, scalar_prefetch = 0 : i64, scratch_operands = 1 : i64, tpu.core_type = #tpu.core_type<tc>, window_params = [{pipeline_mode = #tpu.pipeline_mode<synchronous>, transform_indices = @transform_0, window_bounds = array<i64: 1, 128>}, {pipeline_mode = #tpu.pipeline_mode<synchronous>, transform_indices = @transform_1, window_bounds = array<i64: 1, 128>}, {transform_indices = @transform_2, window_bounds = array<i64: 4, 2048>}, {transform_indices = @transform_3, window_bounds = array<i64: 4, 2048>}, {transform_indices = @transform_4, window_bounds = array<i64: 8, 128>}]} {
    %c0_i32 = arith.constant 0 : i32
    %0 = arith.cmpi eq, %arg1, %c0_i32 : i32
    %1 = arith.extui %0 : i1 to i32
    %c0_i32_0 = arith.constant 0 : i32
    %2 = arith.cmpi ne, %1, %c0_i32_0 : i32
    scf.if %2 {
      %cst_14 = arith.constant 0.000000e+00 : f32
      %32 = vector.broadcast %cst_14 : f32 to vector<8x128xf32>
      %c0_15 = arith.constant 0 : index
      %c0_16 = arith.constant 0 : index
      %33 = vector.load %arg7[%c0_15, %c0_16] : memref<8x128xf32, #tpu.memory_space<vmem>>, vector<8x128xf32>
      tpu.vector_store %arg7[%c0_15, %c0_16], %32 {strides = array<i32>} : memref<8x128xf32, #tpu.memory_space<vmem>>, vector<8x128xf32>,
    } else {
    }
    %c2048_i32 = arith.constant 2048 : i32
    %3 = arith.muli %arg1, %c2048_i32 : i32
    %4 = tpu.iota {dimensions = array<i32: 0>} : vector<2048x128xi32>
    %c0 = arith.constant 0 : index
    %c0_1 = arith.constant 0 : index
    %5 = vector.load %arg2[%c0, %c0_1] : memref<1x128xi32, #tpu.memory_space<vmem>>, vector<1x128xi32>
    %6 = vector.broadcast %3 : i32 to vector<1x128xi32>
    %7 = arith.subi %5, %6 : vector<1x128xi32>
    %c0_2 = arith.constant 0 : index
    %c0_3 = arith.constant 0 : index
    %8 = vector.load %arg3[%c0_2, %c0_3] : memref<1x128xi32, #tpu.memory_space<vmem>>, vector<1x128xi32>
    %9 = vector.broadcast %3 : i32 to vector<1x128xi32>
    %10 = arith.subi %8, %9 : vector<1x128xi32>
    %11 = vector.broadcast %7 : vector<1x128xi32> to vector<2048x128xi32>
    %12 = arith.cmpi sgt, %4, %11 : vector<2048x128xi32>
    %13 = vector.broadcast %10 : vector<1x128xi32> to vector<2048x128xi32>
    %14 = arith.cmpi sle, %4, %13 : vector<2048x128xi32>
    %15 = arith.andi %12, %14 : vector<2048x128xi1>
    %16 = arith.extui %15 : vector<2048x128xi1> to vector<2048x128xi32>
    %17 = arith.sitofp %16 : vector<2048x128xi32> to vector<2048x128xf32>
    %18 = arith.truncf %17 : vector<2048x128xf32> to vector<2048x128xbf16>
    %c0_4 = arith.constant 0 : index
    %c0_5 = arith.constant 0 : index
    %19 = vector.load %arg4[%c0_4, %c0_5] : memref<4x2048xf32, #tpu.memory_space<vmem>>, vector<4x2048xf32>
    %c0_6 = arith.constant 0 : index
    %c0_7 = arith.constant 0 : index
    %20 = vector.load %arg5[%c0_6, %c0_7] : memref<4x2048xf32, #tpu.memory_space<vmem>>, vector<4x2048xf32>
    %21 = arith.mulf %19, %19 : vector<4x2048xf32>
    %22 = arith.mulf %20, %20 : vector<4x2048xf32>
    %23 = tpu.concatenate %21, %22 in 0 : vector<4x2048xf32>, vector<4x2048xf32> -> vector<8x2048xf32>
    %24 = arith.truncf %23 : vector<8x2048xf32> to vector<8x2048xbf16>
    %c0_8 = arith.constant 0 : index
    %c0_9 = arith.constant 0 : index
    %25 = vector.load %arg7[%c0_8, %c0_9] : memref<8x128xf32, #tpu.memory_space<vmem>>, vector<8x128xf32>
    %cst = arith.constant dense<0.000000e+00> : vector<8x128xf32>
    %26 = tpu.matmul %24, %18, %cst {dimension_numbers = #tpu.dot_dimension_numbers<[1], [0], [0], [1], [0, 0, 1, 1], [], []>} : vector<8x2048xbf16>, vector<2048x128xbf16>, vector<8x128xf32> -> vector<8x128xf32>
    %27 = arith.addf %25, %26 : vector<8x128xf32>
    %c0_10 = arith.constant 0 : index
    %c0_11 = arith.constant 0 : index
    %28 = vector.load %arg7[%c0_10, %c0_11] : memref<8x128xf32, #tpu.memory_space<vmem>>, vector<8x128xf32>
    tpu.vector_store %arg7[%c0_10, %c0_11], %27 {strides = array<i32>} : memref<8x128xf32, #tpu.memory_space<vmem>>, vector<8x128xf32>,
    %c0_i32_12 = arith.constant 0 : i32
    %29 = arith.cmpi eq, %arg1, %c0_i32_12 : i32
    %30 = arith.extui %29 : i1 to i32
    %c0_i32_13 = arith.constant 0 : i32
    %31 = arith.cmpi ne, %30, %c0_i32_13 : i32
    scf.if %31 {
      %c0_14 = arith.constant 0 : index
      %c30 = arith.constant 30 : index
      %32 = vector.load %arg7[%c0_14, %c30] : memref<8x128xf32, #tpu.memory_space<vmem>>, vector<8x1xf32>
      %cst_15 = arith.constant 1.000000e-24 : f32
      %33 = vector.broadcast %cst_15 : f32 to vector<8x1xf32>
      %34 = arith.maximumf %32, %33 : vector<8x1xf32>
      %c0_16 = arith.constant 0 : index
      %c0_17 = arith.constant 0 : index
      %35 = vector.load %arg7[%c0_16, %c0_17] : memref<8x128xf32, #tpu.memory_space<vmem>>, vector<8x128xf32>
      %36 = tpu.reciprocal %34 {approx = true} : vector<8x1xf32> -> vector<8x1xf32>
      %37 = vector.broadcast %36 : vector<8x1xf32> to vector<8x128xf32>
      %38 = arith.mulf %35, %37 : vector<8x128xf32>
      %c0_18 = arith.constant 0 : index
      %c0_19 = arith.constant 0 : index
      %39 = vector.load %arg6[%c0_18, %c0_19] : memref<8x128xf32, #tpu.memory_space<vmem>>, vector<8x128xf32>
      tpu.vector_store %arg6[%c0_18, %c0_19], %38 {strides = array<i32>} : memref<8x128xf32, #tpu.memory_space<vmem>>, vector<8x128xf32>,
    } else {
    }
    return
  }
  func.func @transform_0(%arg0: i32, %arg1: i32) -> (i32, i32) {
    %c0_i32 = arith.constant 0 : i32
    %c0_i32_0 = arith.constant 0 : i32
    %c0_i32_1 = arith.constant 0 : i32
    return %c0_i32, %c0_i32_0 : i32, i32
  }
  func.func @transform_1(%arg0: i32, %arg1: i32) -> (i32, i32) {
    %c0_i32 = arith.constant 0 : i32
    %c0_i32_0 = arith.constant 0 : i32
    %c0_i32_1 = arith.constant 0 : i32
    return %c0_i32, %c0_i32_0 : i32, i32
  }
  func.func @transform_2(%arg0: i32, %arg1: i32) -> (i32, i32) {
    %c0_i32 = arith.constant 0 : i32
    return %arg0, %arg1 : i32, i32
  }
  func.func @transform_3(%arg0: i32, %arg1: i32) -> (i32, i32) {
    %c0_i32 = arith.constant 0 : i32
    return %arg0, %arg1 : i32, i32
  }
  func.func @transform_4(%arg0: i32, %arg1: i32) -> (i32, i32) {
    %c0_i32 = arith.constant 0 : i32
    %c0_i32_0 = arith.constant 0 : i32
    return %arg0, %c0_i32 : i32, i32
  }
}

</mosaic_0001>

<llo_original>
// kernel: squeeze.2
$region0: #{squeeze.2}
  %s0 = inlined_call_operand.vmem [shape: f32[1,1,4,30], index: 0, kind: input, shape index: {}]
  %s1 = inlined_call_operand.vmem [shape: f32[4,10,3], index: 1, kind: output, shape index: {}]
  $region1: #{squeeze.2} parent=0
    #allocation0 [shape = 'u8[4096]{0}', space=vmem, size = 0x1000, scoped, tag = 'scoped mem for input reshape']
    %s3 = sshllo.u32 0, 4
    %v4 = vld [vmem:[%s0] sm:%s3]
    %5 = vst [vmem:[#allocation0] sm:%s3] %v4
    %v6 = vld [vmem:[#allocation0] sm:$0xf]
    %vm7 = vcmask 23552
    %8 = vst.msk [vmem:[%s1] ss:$16 sm:$0x3] %vm7, %v6
    %9 = vst.msk [vmem:[%s1] ss:$16 sm:$0xc] %vm7, %v6
    %v10 = vld [vmem:[#allocation0] sm:$0xf]
    %11 = vrot.lane.b32.xlu0 %v10, 125
    %v12 = vpop.permute.xlu0 %11
    %vm13 = vcmask 23552
    %s14 = scalar_lea.vmem %s1, 1
    %15 = vst.msk [vmem:[%s14] ss:$16 sm:$0x3] %vm13, %v12
    %s16 = scalar_lea.vmem %s1, 1
    %17 = vst.msk [vmem:[%s16] ss:$16 sm:$0xc] %vm13, %v12
    %v18 = vld [vmem:[#allocation0] sm:$0xf]
    %19 = vrot.lane.b32.xlu0 %v18, 122
    %v20 = vpop.permute.xlu0 %19
    %vm21 = vcmask 23552
    %s22 = scalar_lea.vmem %s1, 2
    %23 = vst.msk [vmem:[%s22] ss:$16 sm:$0x3] %vm21, %v20
    %s24 = scalar_lea.vmem %s1, 2
    %25 = vst.msk [vmem:[%s24] ss:$16 sm:$0xc] %vm21, %v20
    %v26 = vld [vmem:[#allocation0] sm:$0xf]
    %27 = vrot.lane.b32.xlu0 %v26, 119
    %v28 = vpop.permute.xlu0 %27
    %vm29 = vcmask 23552
    %s30 = scalar_lea.vmem %s1, 3
    %31 = vst.msk [vmem:[%s30] ss:$16 sm:$0x3] %vm29, %v28
    %s32 = scalar_lea.vmem %s1, 3
    %33 = vst.msk [vmem:[%s32] ss:$16 sm:$0xc] %vm29, %v28
    %v34 = vld [vmem:[#allocation0] sm:$0xf]
    %35 = vrot.lane.b32.xlu0 %v34, 116
    %v36 = vpop.permute.xlu0 %35
    %vm37 = vcmask 23552
    %s38 = scalar_lea.vmem %s1, 4
    %39 = vst.msk [vmem:[%s38] ss:$16 sm:$0x3] %vm37, %v36
    %s40 = scalar_lea.vmem %s1, 4
    %41 = vst.msk [vmem:[%s40] ss:$16 sm:$0xc] %vm37, %v36
    %v42 = vld [vmem:[#allocation0] sm:$0xf]
    %43 = vrot.lane.b32.xlu0 %v42, 113
    %v44 = vpop.permute.xlu0 %43
    %vm45 = vcmask 23552
    %s46 = scalar_lea.vmem %s1, 5
    %47 = vst.msk [vmem:[%s46] ss:$16 sm:$0x3] %vm45, %v44
    %s48 = scalar_lea.vmem %s1, 5
    %49 = vst.msk [vmem:[%s48] ss:$16 sm:$0xc] %vm45, %v44
    %v50 = vld [vmem:[#allocation0] sm:$0xf]
    %51 = vrot.lane.b32.xlu0 %v50, 110
    %v52 = vpop.permute.xlu0 %51
    %vm53 = vcmask 23552
    %s54 = scalar_lea.vmem %s1, 6
    %55 = vst.msk [vmem:[%s54] ss:$16 sm:$0x3] %vm53, %v52
    %s56 = scalar_lea.vmem %s1, 6
    %57 = vst.msk [vmem:[%s56] ss:$16 sm:$0xc] %vm53, %v52
    %v58 = vld [vmem:[#allocation0] sm:$0xf]
    %59 = vrot.lane.b32.xlu0 %v58, 107
    %v60 = vpop.permute.xlu0 %59
    %vm61 = vcmask 23552
    %s62 = scalar_lea.vmem %s1, 7
    %63 = vst.msk [vmem:[%s62] ss:$16 sm:$0x3] %vm61, %v60
    %s64 = scalar_lea.vmem %s1, 7
    %65 = vst.msk [vmem:[%s64] ss:$16 sm:$0xc] %vm61, %v60
    %v66 = vld [vmem:[#allocation0] sm:$0xf]
    %67 = vrot.lane.b32.xlu0 %v66, 104
    %v68 = vpop.permute.xlu0 %67
    %vm69 = vcmask 23552
    %s70 = scalar_lea.vmem %s1, 8
    %71 = vst.msk [vmem:[%s70] ss:$16 sm:$0x3] %vm69, %v68
    %s72 = scalar_lea.vmem %s1, 8
    %73 = vst.msk [vmem:[%s72] ss:$16 sm:$0xc] %vm69, %v68
    %v74 = vld [vmem:[#allocation0] sm:$0xf]
    %75 = vrot.lane.b32.xlu0 %v74, 101
    %v76 = vpop.permute.xlu0 %75
    %vm77 = vcmask 23552
    %s78 = scalar_lea.vmem %s1, 9
    %79 = vst.msk [vmem:[%s78] ss:$16 sm:$0x3] %vm77, %v76
    %s80 = scalar_lea.vmem %s1, 9
    %81 = vst.msk [vmem:[%s80] ss:$16 sm:$0xc] %vm77, %v76

// kernel: _mtat_device.1
$region0: #{_mtat_device.1}
  #allocation0 [shape = 'u32[]', space=smem, size = 0x4, offset = 0x4, fixed_abs, tag = 'smem constant byte address 0x4 - core index']
  #allocation1 [shape = 'u32[144,128]{1,0:T(1,128)}', space=vmem, size = 0x12000, scoped, tag = 'internal scratch']
  #allocation2 [shape = 'f32[8,128]{1,0:T(8,128)}', space=vmem, size = 0x1000, scoped, tag = 'scratch operand']
  %s0 = inlined_call_operand.vmem [shape: s32[1,128], index: 0, kind: input, shape index: {}]
  %s1 = inlined_call_operand.vmem [shape: s32[1,128], index: 1, kind: input, shape index: {}]
  %s2 = inlined_call_operand.vmem [shape: f32[4,2048], index: 2, kind: input, shape index: {}]
  %s3 = inlined_call_operand.vmem [shape: f32[4,2048], index: 3, kind: input, shape index: {}]
  %s4 = inlined_call_operand.vmem [shape: f32[8,128], index: 4, kind: output, shape index: {}]
  %s5 = sld [smem:[#allocation0]]
  $region34: #{_mtat_device.1} parent=0
    _
  %s7 = ssub.s32 1, %s5
  %s8 = scalar_select 0, %s7, %s5
  // Predicated region
  $region2: #{_mtat_device.1} parent=0 // pred_check
    _
  $region3: #{_mtat_device.1} parent=0 // pred_check_branch
    %10 = sbr.rel (0) target = $region5
  $region4: #{_mtat_device.1} parent=0 // pred_region
    _
  $region5: #{_mtat_device.1} parent=0 // pred_fallthru
    _
  // Predicated region
  $region6: #{_mtat_device.1} parent=0 // pred_check
    _
  $region7: #{_mtat_device.1} parent=0 // pred_check_branch
    %12 = sbr.rel (0) target = $region9
  $region8: #{_mtat_device.1} parent=0 // pred_region
    _
  $region9: #{_mtat_device.1} parent=0 // pred_fallthru
    _
  // Predicated region
  $region10: #{_mtat_device.1} parent=0 // pred_check
    _
  $region11: #{_mtat_device.1} parent=0 // pred_check_branch
    %14 = sbr.rel (0) target = $region13
  $region12: #{_mtat_device.1} parent=0 // pred_region
    _
  $region13: #{_mtat_device.1} parent=0 // pred_fallthru
    _
  // Predicated region
  $region14: #{_mtat_device.1} parent=0 // pred_check
    _
  $region15: #{_mtat_device.1} parent=0 // pred_check_branch
    %16 = sbr.rel (0) target = $region17
  $region16: #{_mtat_device.1} parent=0 // pred_region
    _
  $region17: #{_mtat_device.1} parent=0 // pred_fallthru
    _
  %p18 = scmp.eq.s32.totalorder 0, 0
  // Predicated region
  $region18: #{_mtat_device.1} parent=0 // pred_check
    %p19 = pneg %p18
  $region19: #{_mtat_device.1} parent=0 // pred_check_branch
    %21 = sbr.rel (%p19) target = $region21
  $region20: #{_mtat_device.1} parent=0 // pred_region
    %22 = vst [vmem:[#allocation2] sm:$0xff] 0.0
  $region21: #{_mtat_device.1} parent=0 // pred_fallthru
    _
  %s23 = smul.u32 0, 2048
  %v24 = vlaneseq
  %v25 = vshrl.u32 %v24, 7
  %v26 = vadd.s32 %v25, 8
  %v27 = vadd.s32 %v25, 16
  %v28 = vadd.s32 %v25, 24
  %v29 = vadd.s32 %v25, 32
  %v30 = vadd.s32 %v25, 40
  %v31 = vadd.s32 %v25, 48
  %v32 = vadd.s32 %v25, 56
  %v33 = vadd.s32 %v25, 64
  %v34 = vadd.s32 %v25, 72
  %v35 = vadd.s32 %v25, 80
  %v36 = vadd.s32 %v25, 88
  %v37 = vadd.s32 %v25, 96
  %v38 = vadd.s32 %v25, 104
  %v39 = vadd.s32 %v25, 112
  %v40 = vadd.s32 %v25, 120
  %v41 = vadd.s32 %v25, 128
  %v42 = vadd.s32 %v25, 136
  %v43 = vadd.s32 %v25, 144
  %v44 = vadd.s32 %v25, 152
  %v45 = vadd.s32 %v25, 160
  %v46 = vadd.s32 %v25, 168
  %v47 = vadd.s32 %v25, 176
  %v48 = vadd.s32 %v25, 184
  %v49 = vadd.s32 %v25, 192
  %v50 = vadd.s32 %v25, 200
  %v51 = vadd.s32 %v25, 208
  %v52 = vadd.s32 %v25, 216
  %v53 = vadd.s32 %v25, 224
  %v54 = vadd.s32 %v25, 232
  %v55 = vadd.s32 %v25, 240
  %v56 = vadd.s32 %v25, 248
  %v57 = vadd.s32 %v25, 256
  %v58 = vadd.s32 %v25, 264
  %v59 = vadd.s32 %v25, 272
  %v60 = vadd.s32 %v25, 280
  %v61 = vadd.s32 %v25, 288
  %v62 = vadd.s32 %v25, 296
  %v63 = vadd.s32 %v25, 304
  %v64 = vadd.s32 %v25, 312
  %v65 = vadd.s32 %v25, 320
  %v66 = vadd.s32 %v25, 328
  %v67 = vadd.s32 %v25, 336
  %v68 = vadd.s32 %v25, 344
  %v69 = vadd.s32 %v25, 352
  %v70 = vadd.s32 %v25, 360
  %v71 = vadd.s32 %v25, 368
  %v72 = vadd.s32 %v25, 376
  %v73 = vadd.s32 %v25, 384
  %v74 = vadd.s32 %v25, 392
  %v75 = vadd.s32 %v25, 400
  %v76 = vadd.s32 %v25, 408
  %v77 = vadd.s32 %v25, 416
  %v78 = vadd.s32 %v25, 424
  %v79 = vadd.s32 %v25, 432
  %v80 = vadd.s32 %v25, 440
  %v81 = vadd.s32 %v25, 448
  %v82 = vadd.s32 %v25, 456
  %v83 = vadd.s32 %v25, 464
  %v84 = vadd.s32 %v25, 472
  %v85 = vadd.s32 %v25, 480
  %v86 = vadd.s32 %v25, 488
  %v87 = vadd.s32 %v25, 496
  %v88 = vadd.s32 %v25, 504
  %v89 = vadd.s32 %v25, 512
  %v90 = vadd.s32 %v25, 520
  %v91 = vadd.s32 %v25, 528
  %v92 = vadd.s32 %v25, 536
  %v93 = vadd.s32 %v25, 544
  %v94 = vadd.s32 %v25, 552
  %v95 = vadd.s32 %v25, 560
  %v96 = vadd.s32 %v25, 568
  %v97 = vadd.s32 %v25, 576
  %v98 = vadd.s32 %v25, 584
  %v99 = vadd.s32 %v25, 592
  %v100 = vadd.s32 %v25, 600
  %v101 = vadd.s32 %v25, 608
  %v102 = vadd.s32 %v25, 616
  %v103 = vadd.s32 %v25, 624
  %v104 = vadd.s32 %v25, 632
  %v105 = vadd.s32 %v25, 640
  %v106 = vadd.s32 %v25, 648
  %v107 = vadd.s32 %v25, 656
  %v108 = vadd.s32 %v25, 664
  %v109 = vadd.s32 %v25, 672
  %v110 = vadd.s32 %v25, 680
  %v111 = vadd.s32 %v25, 688
  %v112 = vadd.s32 %v25, 696
  %v113 = vadd.s32 %v25, 704
  %v114 = vadd.s32 %v25, 712
  %v115 = vadd.s32 %v25, 720
  %v116 = vadd.s32 %v25, 728
  %v117 = vadd.s32 %v25, 736
  %v118 = vadd.s32 %v25, 744
  %v119 = vadd.s32 %v25, 752
  %v120 = vadd.s32 %v25, 760
  %v121 = vadd.s32 %v25, 768
  %v122 = vadd.s32 %v25, 776
  %v123 = vadd.s32 %v25, 784
  %v124 = vadd.s32 %v25, 792
  %v125 = vadd.s32 %v25, 800
  %v126 = vadd.s32 %v25, 808
  %v127 = vadd.s32 %v25, 816
  %v128 = vadd.s32 %v25, 824
  %v129 = vadd.s32 %v25, 832
  %v130 = vadd.s32 %v25, 840
  %v131 = vadd.s32 %v25, 848
  %v132 = vadd.s32 %v25, 856
  %v133 = vadd.s32 %v25, 864
  %v134 = vadd.s32 %v25, 872
  %v135 = vadd.s32 %v25, 880
  %v136 = vadd.s32 %v25, 888
  %v137 = vadd.s32 %v25, 896
  %v138 = vadd.s32 %v25, 904
  %v139 = vadd.s32 %v25, 912
  %v140 = vadd.s32 %v25, 920
  %v141 = vadd.s32 %v25, 928
  %v142 = vadd.s32 %v25, 936
  %v143 = vadd.s32 %v25, 944
  %v144 = vadd.s32 %v25, 952
  %v145 = vadd.s32 %v25, 960
  %v146 = vadd.s32 %v25, 968
  %v147 = vadd.s32 %v25, 976
  %v148 = vadd.s32 %v25, 984
  %v149 = vadd.s32 %v25, 992
  %v150 = vadd.s32 %v25, 1000
  %v151 = vadd.s32 %v25, 1008
  %v152 = vadd.s32 %v25, 1016
  %v153 = vadd.s32 %v25, 1024
  %v154 = vadd.s32 %v25, 1032
  %v155 = vadd.s32 %v25, 1040
  %v156 = vadd.s32 %v25, 1048
  %v157 = vadd.s32 %v25, 1056
  %v158 = vadd.s32 %v25, 1064
  %v159 = vadd.s32 %v25, 1072
  %v160 = vadd.s32 %v25, 1080
  %v161 = vadd.s32 %v25, 1088
  %v162 = vadd.s32 %v25, 1096
  %v163 = vadd.s32 %v25, 1104
  %v164 = vadd.s32 %v25, 1112
  %v165 = vadd.s32 %v25, 1120
  %v166 = vadd.s32 %v25, 1128
  %v167 = vadd.s32 %v25, 1136
  %v168 = vadd.s32 %v25, 1144
  %v169 = vadd.s32 %v25, 1152
  %v170 = vadd.s32 %v25, 1160
  %v171 = vadd.s32 %v25, 1168
  %v172 = vadd.s32 %v25, 1176
  %v173 = vadd.s32 %v25, 1184
  %v174 = vadd.s32 %v25, 1192
  %v175 = vadd.s32 %v25, 1200
  %v176 = vadd.s32 %v25, 1208
  %v177 = vadd.s32 %v25, 1216
  %v178 = vadd.s32 %v25, 1224
  %v179 = vadd.s32 %v25, 1232
  %v180 = vadd.s32 %v25, 1240
  %v181 = vadd.s32 %v25, 1248
  %v182 = vadd.s32 %v25, 1256
  %v183 = vadd.s32 %v25, 1264
  %v184 = vadd.s32 %v25, 1272
  %v185 = vadd.s32 %v25, 1280
  %v186 = vadd.s32 %v25, 1288
  %v187 = vadd.s32 %v25, 1296
  %v188 = vadd.s32 %v25, 1304
  %v189 = vadd.s32 %v25, 1312
  %v190 = vadd.s32 %v25, 1320
  %v191 = vadd.s32 %v25, 1328
  %v192 = vadd.s32 %v25, 1336
  %v193 = vadd.s32 %v25, 1344
  %v194 = vadd.s32 %v25, 1352
  %v195 = vadd.s32 %v25, 1360
  %v196 = vadd.s32 %v25, 1368
  %v197 = vadd.s32 %v25, 1376
  %v198 = vadd.s32 %v25, 1384
  %v199 = vadd.s32 %v25, 1392
  %v200 = vadd.s32 %v25, 1400
  %v201 = vadd.s32 %v25, 1408
  %v202 = vadd.s32 %v25, 1416
  %v203 = vadd.s32 %v25, 1424
  %v204 = vadd.s32 %v25, 1432
  %v205 = vadd.s32 %v25, 1440
  %v206 = vadd.s32 %v25, 1448
  %v207 = vadd.s32 %v25, 1456
  %v208 = vadd.s32 %v25, 1464
  %v209 = vadd.s32 %v25, 1472
  %v210 = vadd.s32 %v25, 1480
  %v211 = vadd.s32 %v25, 1488
  %v212 = vadd.s32 %v25, 1496
  %v213 = vadd.s32 %v25, 1504
  %v214 = vadd.s32 %v25, 1512
  %v215 = vadd.s32 %v25, 1520
  %v216 = vadd.s32 %v25, 1528
  %v217 = vadd.s32 %v25, 1536
  %v218 = vadd.s32 %v25, 1544
  %v219 = vadd.s32 %v25, 1552
  %v220 = vadd.s32 %v25, 1560
  %v221 = vadd.s32 %v25, 1568
  %v222 = vadd.s32 %v25, 1576
  %v223 = vadd.s32 %v25, 1584
  %v224 = vadd.s32 %v25, 1592
  %v225 = vadd.s32 %v25, 1600
  %v226 = vadd.s32 %v25, 1608
  %v227 = vadd.s32 %v25, 1616
  %v228 = vadd.s32 %v25, 1624
  %v229 = vadd.s32 %v25, 1632
  %v230 = vadd.s32 %v25, 1640
  %v231 = vadd.s32 %v25, 1648
  %v232 = vadd.s32 %v25, 1656
  %v233 = vadd.s32 %v25, 1664
  %v234 = vadd.s32 %v25, 1672
  %v235 = vadd.s32 %v25, 1680
  %v236 = vadd.s32 %v25, 1688
  %v237 = vadd.s32 %v25, 1696
  %v238 = vadd.s32 %v25, 1704
  %v239 = vadd.s32 %v25, 1712
  %v240 = vadd.s32 %v25, 1720
  %v241 = vadd.s32 %v25, 1728
  %v242 = vadd.s32 %v25, 1736
  %v243 = vadd.s32 %v25, 1744
  %v244 = vadd.s32 %v25, 1752
  %v245 = vadd.s32 %v25, 1760
  %v246 = vadd.s32 %v25, 1768
  %v247 = vadd.s32 %v25, 1776
  %v248 = vadd.s32 %v25, 1784
  %v249 = vadd.s32 %v25, 1792
  %v250 = vadd.s32 %v25, 1800
  %v251 = vadd.s32 %v25, 1808
  %v252 = vadd.s32 %v25, 1816
  %v253 = vadd.s32 %v25, 1824
  %v254 = vadd.s32 %v25, 1832
  %v255 = vadd.s32 %v25, 1840
  %v256 = vadd.s32 %v25, 1848
  %v257 = vadd.s32 %v25, 1856
  %v258 = vadd.s32 %v25, 1864
  %v259 = vadd.s32 %v25, 1872
  %v260 = vadd.s32 %v25, 1880
  %v261 = vadd.s32 %v25, 1888
  %v262 = vadd.s32 %v25, 1896
  %v263 = vadd.s32 %v25, 1904
  %v264 = vadd.s32 %v25, 1912
  %v265 = vadd.s32 %v25, 1920
  %v266 = vadd.s32 %v25, 1928
  %v267 = vadd.s32 %v25, 1936
  %v268 = vadd.s32 %v25, 1944
  %v269 = vadd.s32 %v25, 1952
  %v270 = vadd.s32 %v25, 1960
  %v271 = vadd.s32 %v25, 1968
  %v272 = vadd.s32 %v25, 1976
  %v273 = vadd.s32 %v25, 1984
  %v274 = vadd.s32 %v25, 1992
  %v275 = vadd.s32 %v25, 2000
  %v276 = vadd.s32 %v25, 2008
  %v277 = vadd.s32 %v25, 2016
  %v278 = vadd.s32 %v25, 2024
  %v279 = vadd.s32 %v25, 2032
  %v280 = vadd.s32 %v25, 2040
  %v281 = vld [vmem:[%s0] sm:$0x1]
  %v282 = vstv %s23
  %v283 = vsub.s32 %v281, %v282
  %v284 = vld [vmem:[%s1] sm:$0x1]
  %v285 = vsub.s32 %v284, %v282
  %v286 = vlaneseq
  %v287 = vshrl.u32 %v286, 7
  %v288 = vsub.s32 0, %v287
  %v289 = vrot.slane %v283, %v288
  %vm290 = vcmp.gt.s32.totalorder %v25, %v289
  %vm291 = vcmp.gt.s32.totalorder %v26, %v289
  %vm292 = vcmp.gt.s32.totalorder %v27, %v289
  %vm293 = vcmp.gt.s32.totalorder %v28, %v289
  %vm294 = vcmp.gt.s32.totalorder %v29, %v289
  %vm295 = vcmp.gt.s32.totalorder %v30, %v289
  %vm296 = vcmp.gt.s32.totalorder %v31, %v289
  %vm297 = vcmp.gt.s32.totalorder %v32, %v289
  %vm298 = vcmp.gt.s32.totalorder %v33, %v289
  %vm299 = vcmp.gt.s32.totalorder %v34, %v289
  %vm300 = vcmp.gt.s32.totalorder %v35, %v289
  %vm301 = vcmp.gt.s32.totalorder %v36, %v289
  %vm302 = vcmp.gt.s32.totalorder %v37, %v289
  %vm303 = vcmp.gt.s32.totalorder %v38, %v289
  %vm304 = vcmp.gt.s32.totalorder %v39, %v289
  %vm305 = vcmp.gt.s32.totalorder %v40, %v289
  %vm306 = vcmp.gt.s32.totalorder %v41, %v289
  %vm307 = vcmp.gt.s32.totalorder %v42, %v289
  %vm308 = vcmp.gt.s32.totalorder %v43, %v289
  %vm309 = vcmp.gt.s32.totalorder %v44, %v289
  %vm310 = vcmp.gt.s32.totalorder %v45, %v289
  %vm311 = vcmp.gt.s32.totalorder %v46, %v289
  %vm312 = vcmp.gt.s32.totalorder %v47, %v289
  %vm313 = vcmp.gt.s32.totalorder %v48, %v289
  %vm314 = vcmp.gt.s32.totalorder %v49, %v289
  %vm315 = vcmp.gt.s32.totalorder %v50, %v289
  %vm316 = vcmp.gt.s32.totalorder %v51, %v289
  %vm317 = vcmp.gt.s32.totalorder %v52, %v289
  %vm318 = vcmp.gt.s32.totalorder %v53, %v289
  %vm319 = vcmp.gt.s32.totalorder %v54, %v289
  %vm320 = vcmp.gt.s32.totalorder %v55, %v289
  %vm321 = vcmp.gt.s32.totalorder %v56, %v289
  %vm322 = vcmp.gt.s32.totalorder %v57, %v289
  %vm323 = vcmp.gt.s32.totalorder %v58, %v289
  %vm324 = vcmp.gt.s32.totalorder %v59, %v289
  %vm325 = vcmp.gt.s32.totalorder %v60, %v289
  %vm326 = vcmp.gt.s32.totalorder %v61, %v289
  %vm327 = vcmp.gt.s32.totalorder %v62, %v289
  %vm328 = vcmp.gt.s32.totalorder %v63, %v289
  %vm329 = vcmp.gt.s32.totalorder %v64, %v289
  %vm330 = vcmp.gt.s32.totalorder %v65, %v289
  %vm331 = vcmp.gt.s32.totalorder %v66, %v289
  %vm332 = vcmp.gt.s32.totalorder %v67, %v289
  %vm333 = vcmp.gt.s32.totalorder %v68, %v289
  %vm334 = vcmp.gt.s32.totalorder %v69, %v289
  %vm335 = vcmp.gt.s32.totalorder %v70, %v289
  %vm336 = vcmp.gt.s32.totalorder %v71, %v289
  %vm337 = vcmp.gt.s32.totalorder %v72, %v289
  %vm338 = vcmp.gt.s32.totalorder %v73, %v289
  %vm339 = vcmp.gt.s32.totalorder %v74, %v289
  %vm340 = vcmp.gt.s32.totalorder %v75, %v289
  %vm341 = vcmp.gt.s32.totalorder %v76, %v289
  %vm342 = vcmp.gt.s32.totalorder %v77, %v289
  %vm343 = vcmp.gt.s32.totalorder %v78, %v289
  %vm344 = vcmp.gt.s32.totalorder %v79, %v289
  %vm345 = vcmp.gt.s32.totalorder %v80, %v289
  %vm346 = vcmp.gt.s32.totalorder %v81, %v289
  %vm347 = vcmp.gt.s32.totalorder %v82, %v289
  %vm348 = vcmp.gt.s32.totalorder %v83, %v289
  %vm349 = vcmp.gt.s32.totalorder %v84, %v289
  %vm350 = vcmp.gt.s32.totalorder %v85, %v289
  %vm351 = vcmp.gt.s32.totalorder %v86, %v289
  %vm352 = vcmp.gt.s32.totalorder %v87, %v289
  %vm353 = vcmp.gt.s32.totalorder %v88, %v289
  %vm354 = vcmp.gt.s32.totalorder %v89, %v289
  %vm355 = vcmp.gt.s32.totalorder %v90, %v289
  %vm356 = vcmp.gt.s32.totalorder %v91, %v289
  %vm357 = vcmp.gt.s32.totalorder %v92, %v289
  %vm358 = vcmp.gt.s32.totalorder %v93, %v289
  %vm359 = vcmp.gt.s32.totalorder %v94, %v289
  %vm360 = vcmp.gt.s32.totalorder %v95, %v289
  %vm361 = vcmp.gt.s32.totalorder %v96, %v289
  %vm362 = vcmp.gt.s32.totalorder %v97, %v289
  %vm363 = vcmp.gt.s32.totalorder %v98, %v289
  %vm364 = vcmp.gt.s32.totalorder %v99, %v289
  %vm365 = vcmp.gt.s32.totalorder %v100, %v289
  %vm366 = vcmp.gt.s32.totalorder %v101, %v289
  %vm367 = vcmp.gt.s32.totalorder %v102, %v289
  %vm368 = vcmp.gt.s32.totalorder %v103, %v289
  %vm369 = vcmp.gt.s32.totalorder %v104, %v289
  %vm370 = vcmp.gt.s32.totalorder %v105, %v289
  %vm371 = vcmp.gt.s32.totalorder %v106, %v289
  %vm372 = vcmp.gt.s32.totalorder %v107, %v289
  %vm373 = vcmp.gt.s32.totalorder %v108, %v289
  %vm374 = vcmp.gt.s32.totalorder %v109, %v289
  %vm375 = vcmp.gt.s32.totalorder %v110, %v289
  %vm376 = vcmp.gt.s32.totalorder %v111, %v289
  %vm377 = vcmp.gt.s32.totalorder %v112, %v289
  %vm378 = vcmp.gt.s32.totalorder %v113, %v289
  %vm379 = vcmp.gt.s32.totalorder %v114, %v289
  %vm380 = vcmp.gt.s32.totalorder %v115, %v289
  %vm381 = vcmp.gt.s32.totalorder %v116, %v289
  %vm382 = vcmp.gt.s32.totalorder %v117, %v289
  %vm383 = vcmp.gt.s32.totalorder %v118, %v289
  %vm384 = vcmp.gt.s32.totalorder %v119, %v289
  %vm385 = vcmp.gt.s32.totalorder %v120, %v289
  %vm386 = vcmp.gt.s32.totalorder %v121, %v289
  %vm387 = vcmp.gt.s32.totalorder %v122, %v289
  %vm388 = vcmp.gt.s32.totalorder %v123, %v289
  %vm389 = vcmp.gt.s32.totalorder %v124, %v289
  %vm390 = vcmp.gt.s32.totalorder %v125, %v289
  %vm391 = vcmp.gt.s32.totalorder %v126, %v289
  %vm392 = vcmp.gt.s32.totalorder %v127, %v289
  %vm393 = vcmp.gt.s32.totalorder %v128, %v289
  %vm394 = vcmp.gt.s32.totalorder %v129, %v289
  %vm395 = vcmp.gt.s32.totalorder %v130, %v289
  %vm396 = vcmp.gt.s32.totalorder %v131, %v289
  %vm397 = vcmp.gt.s32.totalorder %v132, %v289
  %vm398 = vcmp.gt.s32.totalorder %v133, %v289
  %vm399 = vcmp.gt.s32.totalorder %v134, %v289
  %vm400 = vcmp.gt.s32.totalorder %v135, %v289
  %vm401 = vcmp.gt.s32.totalorder %v136, %v289
  %vm402 = vcmp.gt.s32.totalorder %v137, %v289
  %vm403 = vcmp.gt.s32.totalorder %v138, %v289
  %vm404 = vcmp.gt.s32.totalorder %v139, %v289
  %vm405 = vcmp.gt.s32.totalorder %v140, %v289
  %vm406 = vcmp.gt.s32.totalorder %v141, %v289
  %vm407 = vcmp.gt.s32.totalorder %v142, %v289
  %vm408 = vcmp.gt.s32.totalorder %v143, %v289
  %vm409 = vcmp.gt.s32.totalorder %v144, %v289
  %vm410 = vcmp.gt.s32.totalorder %v145, %v289
  %vm411 = vcmp.gt.s32.totalorder %v146, %v289
  %vm412 = vcmp.gt.s32.totalorder %v147, %v289
  %vm413 = vcmp.gt.s32.totalorder %v148, %v289
  %vm414 = vcmp.gt.s32.totalorder %v149, %v289
  %vm415 = vcmp.gt.s32.totalorder %v150, %v289
  %vm416 = vcmp.gt.s32.totalorder %v151, %v289
  %vm417 = vcmp.gt.s32.totalorder %v152, %v289
  %vm418 = vcmp.gt.s32.totalorder %v153, %v289
  %vm419 = vcmp.gt.s32.totalorder %v154, %v289
  %vm420 = vcmp.gt.s32.totalorder %v155, %v289
  %vm421 = vcmp.gt.s32.totalorder %v156, %v289
  %vm422 = vcmp.gt.s32.totalorder %v157, %v289
  %vm423 = vcmp.gt.s32.totalorder %v158, %v289
  %vm424 = vcmp.gt.s32.totalorder %v159, %v289
  %vm425 = vcmp.gt.s32.totalorder %v160, %v289
  %vm426 = vcmp.gt.s32.totalorder %v161, %v289
  %vm427 = vcmp.gt.s32.totalorder %v162, %v289
  %vm428 = vcmp.gt.s32.totalorder %v163, %v289
  %vm429 = vcmp.gt.s32.totalorder %v164, %v289
  %vm430 = vcmp.gt.s32.totalorder %v165, %v289
  %vm431 = vcmp.gt.s32.totalorder %v166, %v289
  %vm432 = vcmp.gt.s32.totalorder %v167, %v289
  %vm433 = vcmp.gt.s32.totalorder %v168, %v289
  %vm434 = vcmp.gt.s32.totalorder %v169, %v289
  %vm435 = vcmp.gt.s32.totalorder %v170, %v289
  %vm436 = vcmp.gt.s32.totalorder %v171, %v289
  %vm437 = vcmp.gt.s32.totalorder %v172, %v289
  %vm438 = vcmp.gt.s32.totalorder %v173, %v289
  %vm439 = vcmp.gt.s32.totalorder %v174, %v289
  %vm440 = vcmp.gt.s32.totalorder %v175, %v289
  %vm441 = vcmp.gt.s32.totalorder %v176, %v289
  %vm442 = vcmp.gt.s32.totalorder %v177, %v289
  %vm443 = vcmp.gt.s32.totalorder %v178, %v289
  %vm444 = vcmp.gt.s32.totalorder %v179, %v289
  %vm445 = vcmp.gt.s32.totalorder %v180, %v289
  %vm446 = vcmp.gt.s32.totalorder %v181, %v289
  %vm447 = vcmp.gt.s32.totalorder %v182, %v289
  %vm448 = vcmp.gt.s32.totalorder %v183, %v289
  %vm449 = vcmp.gt.s32.totalorder %v184, %v289
  %vm450 = vcmp.gt.s32.totalorder %v185, %v289
  %vm451 = vcmp.gt.s32.totalorder %v186, %v289
  %vm452 = vcmp.gt.s32.totalorder %v187, %v289
  %vm453 = vcmp.gt.s32.totalorder %v188, %v289
  %vm454 = vcmp.gt.s32.totalorder %v189, %v289
  %vm455 = vcmp.gt.s32.totalorder %v190, %v289
  %vm456 = vcmp.gt.s32.totalorder %v191, %v289
  %vm457 = vcmp.gt.s32.totalorder %v192, %v289
  %vm458 = vcmp.gt.s32.totalorder %v193, %v289
  %vm459 = vcmp.gt.s32.totalorder %v194, %v289
  %vm460 = vcmp.gt.s32.totalorder %v195, %v289
  %vm461 = vcmp.gt.s32.totalorder %v196, %v289
  %vm462 = vcmp.gt.s32.totalorder %v197, %v289
  %vm463 = vcmp.gt.s32.totalorder %v198, %v289
  %vm464 = vcmp.gt.s32.totalorder %v199, %v289
  %vm465 = vcmp.gt.s32.totalorder %v200, %v289
  %vm466 = vcmp.gt.s32.totalorder %v201, %v289
  %vm467 = vcmp.gt.s32.totalorder %v202, %v289
  %vm468 = vcmp.gt.s32.totalorder %v203, %v289
  %vm469 = vcmp.gt.s32.totalorder %v204, %v289
  %vm470 = vcmp.gt.s32.totalorder %v205, %v289
  %vm471 = vcmp.gt.s32.totalorder %v206, %v289
  %vm472 = vcmp.gt.s32.totalorder %v207, %v289
  %vm473 = vcmp.gt.s32.totalorder %v208, %v289
  %vm474 = vcmp.gt.s32.totalorder %v209, %v289
  %vm475 = vcmp.gt.s32.totalorder %v210, %v289
  %vm476 = vcmp.gt.s32.totalorder %v211, %v289
  %vm477 = vcmp.gt.s32.totalorder %v212, %v289
  %vm478 = vcmp.gt.s32.totalorder %v213, %v289
  %vm479 = vcmp.gt.s32.totalorder %v214, %v289
  %vm480 = vcmp.gt.s32.totalorder %v215, %v289
  %vm481 = vcmp.gt.s32.totalorder %v216, %v289
  %vm482 = vcmp.gt.s32.totalorder %v217, %v289
  %vm483 = vcmp.gt.s32.totalorder %v218, %v289
  %vm484 = vcmp.gt.s32.totalorder %v219, %v289
  %vm485 = vcmp.gt.s32.totalorder %v220, %v289
  %vm486 = vcmp.gt.s32.totalorder %v221, %v289
  %vm487 = vcmp.gt.s32.totalorder %v222, %v289
  %vm488 = vcmp.gt.s32.totalorder %v223, %v289
  %vm489 = vcmp.gt.s32.totalorder %v224, %v289
  %vm490 = vcmp.gt.s32.totalorder %v225, %v289
  %vm491 = vcmp.gt.s32.totalorder %v226, %v289
  %vm492 = vcmp.gt.s32.totalorder %v227, %v289
  %vm493 = vcmp.gt.s32.totalorder %v228, %v289
  %vm494 = vcmp.gt.s32.totalorder %v229, %v289
  %vm495 = vcmp.gt.s32.totalorder %v230, %v289
  %vm496 = vcmp.gt.s32.totalorder %v231, %v289
  %vm497 = vcmp.gt.s32.totalorder %v232, %v289
  %vm498 = vcmp.gt.s32.totalorder %v233, %v289
  %vm499 = vcmp.gt.s32.totalorder %v234, %v289
  %vm500 = vcmp.gt.s32.totalorder %v235, %v289
  %vm501 = vcmp.gt.s32.totalorder %v236, %v289
  %vm502 = vcmp.gt.s32.totalorder %v237, %v289
  %vm503 = vcmp.gt.s32.totalorder %v238, %v289
  %vm504 = vcmp.gt.s32.totalorder %v239, %v289
  %vm505 = vcmp.gt.s32.totalorder %v240, %v289
  %vm506 = vcmp.gt.s32.totalorder %v241, %v289
  %vm507 = vcmp.gt.s32.totalorder %v242, %v289
  %vm508 = vcmp.gt.s32.totalorder %v243, %v289
  %vm509 = vcmp.gt.s32.totalorder %v244, %v289
  %vm510 = vcmp.gt.s32.totalorder %v245, %v289
  %vm511 = vcmp.gt.s32.totalorder %v246, %v289
  %vm512 = vcmp.gt.s32.totalorder %v247, %v289
  %vm513 = vcmp.gt.s32.totalorder %v248, %v289
  %vm514 = vcmp.gt.s32.totalorder %v249, %v289
  %vm515 = vcmp.gt.s32.totalorder %v250, %v289
  %vm516 = vcmp.gt.s32.totalorder %v251, %v289
  %vm517 = vcmp.gt.s32.totalorder %v252, %v289
  %vm518 = vcmp.gt.s32.totalorder %v253, %v289
  %vm519 = vcmp.gt.s32.totalorder %v254, %v289
  %vm520 = vcmp.gt.s32.totalorder %v255, %v289
  %vm521 = vcmp.gt.s32.totalorder %v256, %v289
  %vm522 = vcmp.gt.s32.totalorder %v257, %v289
  %vm523 = vcmp.gt.s32.totalorder %v258, %v289
  %vm524 = vcmp.gt.s32.totalorder %v259, %v289
  %vm525 = vcmp.gt.s32.totalorder %v260, %v289
  %vm526 = vcmp.gt.s32.totalorder %v261, %v289
  %vm527 = vcmp.gt.s32.totalorder %v262, %v289
  %vm528 = vcmp.gt.s32.totalorder %v263, %v289
  %vm529 = vcmp.gt.s32.totalorder %v264, %v289
  %vm530 = vcmp.gt.s32.totalorder %v265, %v289
  %vm531 = vcmp.gt.s32.totalorder %v266, %v289
  %vm532 = vcmp.gt.s32.totalorder %v267, %v289
  %vm533 = vcmp.gt.s32.totalorder %v268, %v289
  %vm534 = vcmp.gt.s32.totalorder %v269, %v289
  %vm535 = vcmp.gt.s32.totalorder %v270, %v289
  %vm536 = vcmp.gt.s32.totalorder %v271, %v289
  %vm537 = vcmp.gt.s32.totalorder %v272, %v289
  %vm538 = vcmp.gt.s32.totalorder %v273, %v289
  %vm539 = vcmp.gt.s32.totalorder %v274, %v289
  %vm540 = vcmp.gt.s32.totalorder %v275, %v289
  %vm541 = vcmp.gt.s32.totalorder %v276, %v289
  %vm542 = vcmp.gt.s32.totalorder %v277, %v289
  %vm543 = vcmp.gt.s32.totalorder %v278, %v289
  %vm544 = vcmp.gt.s32.totalorder %v279, %v289
  %vm545 = vcmp.gt.s32.totalorder %v280, %v289
  %v546 = vlaneseq
  %v547 = vshrl.u32 %v546, 7
  %v548 = vsub.s32 0, %v547
  %v549 = vrot.slane %v285, %v548
  %vm550 = vcmp.le.s32.totalorder %v25, %v549
  %vm551 = vcmp.le.s32.totalorder %v26, %v549
  %vm552 = vcmp.le.s32.totalorder %v27, %v549
  %vm553 = vcmp.le.s32.totalorder %v28, %v549
  %vm554 = vcmp.le.s32.totalorder %v29, %v549
  %vm555 = vcmp.le.s32.totalorder %v30, %v549
  %vm556 = vcmp.le.s32.totalorder %v31, %v549
  %vm557 = vcmp.le.s32.totalorder %v32, %v549
  %vm558 = vcmp.le.s32.totalorder %v33, %v549
  %vm559 = vcmp.le.s32.totalorder %v34, %v549
  %vm560 = vcmp.le.s32.totalorder %v35, %v549
  %vm561 = vcmp.le.s32.totalorder %v36, %v549
  %vm562 = vcmp.le.s32.totalorder %v37, %v549
  %vm563 = vcmp.le.s32.totalorder %v38, %v549
  %vm564 = vcmp.le.s32.totalorder %v39, %v549
  %vm565 = vcmp.le.s32.totalorder %v40, %v549
  %vm566 = vcmp.le.s32.totalorder %v41, %v549
  %vm567 = vcmp.le.s32.totalorder %v42, %v549
  %vm568 = vcmp.le.s32.totalorder %v43, %v549
  %vm569 = vcmp.le.s32.totalorder %v44, %v549
  %vm570 = vcmp.le.s32.totalorder %v45, %v549
  %vm571 = vcmp.le.s32.totalorder %v46, %v549
  %vm572 = vcmp.le.s32.totalorder %v47, %v549
  %vm573 = vcmp.le.s32.totalorder %v48, %v549
  %vm574 = vcmp.le.s32.totalorder %v49, %v549
  %vm575 = vcmp.le.s32.totalorder %v50, %v549
  %vm576 = vcmp.le.s32.totalorder %v51, %v549
  %vm577 = vcmp.le.s32.totalorder %v52, %v549
  %vm578 = vcmp.le.s32.totalorder %v53, %v549
  %vm579 = vcmp.le.s32.totalorder %v54, %v549
  %vm580 = vcmp.le.s32.totalorder %v55, %v549
  %vm581 = vcmp.le.s32.totalorder %v56, %v549
  %vm582 = vcmp.le.s32.totalorder %v57, %v549
  %vm583 = vcmp.le.s32.totalorder %v58, %v549
  %vm584 = vcmp.le.s32.totalorder %v59, %v549
  %vm585 = vcmp.le.s32.totalorder %v60, %v549
  %vm586 = vcmp.le.s32.totalorder %v61, %v549
  %vm587 = vcmp.le.s32.totalorder %v62, %v549
  %vm588 = vcmp.le.s32.totalorder %v63, %v549
  %vm589 = vcmp.le.s32.totalorder %v64, %v549
  %vm590 = vcmp.le.s32.totalorder %v65, %v549
  %vm591 = vcmp.le.s32.totalorder %v66, %v549
  %vm592 = vcmp.le.s32.totalorder %v67, %v549
  %vm593 = vcmp.le.s32.totalorder %v68, %v549
  %vm594 = vcmp.le.s32.totalorder %v69, %v549
  %vm595 = vcmp.le.s32.totalorder %v70, %v549
  %vm596 = vcmp.le.s32.totalorder %v71, %v549
  %vm597 = vcmp.le.s32.totalorder %v72, %v549
  %vm598 = vcmp.le.s32.totalorder %v73, %v549
  %vm599 = vcmp.le.s32.totalorder %v74, %v549
  %vm600 = vcmp.le.s32.totalorder %v75, %v549
  %vm601 = vcmp.le.s32.totalorder %v76, %v549
  %vm602 = vcmp.le.s32.totalorder %v77, %v549
  %vm603 = vcmp.le.s32.totalorder %v78, %v549
  %vm604 = vcmp.le.s32.totalorder %v79, %v549
  %vm605 = vcmp.le.s32.totalorder %v80, %v549
  %vm606 = vcmp.le.s32.totalorder %v81, %v549
  %vm607 = vcmp.le.s32.totalorder %v82, %v549
  %vm608 = vcmp.le.s32.totalorder %v83, %v549
  %vm609 = vcmp.le.s32.totalorder %v84, %v549
  %vm610 = vcmp.le.s32.totalorder %v85, %v549
  %vm611 = vcmp.le.s32.totalorder %v86, %v549
  %vm612 = vcmp.le.s32.totalorder %v87, %v549
  %vm613 = vcmp.le.s32.totalorder %v88, %v549
  %vm614 = vcmp.le.s32.totalorder %v89, %v549
  %vm615 = vcmp.le.s32.totalorder %v90, %v549
  %vm616 = vcmp.le.s32.totalorder %v91, %v549
  %vm617 = vcmp.le.s32.totalorder %v92, %v549
  %vm618 = vcmp.le.s32.totalorder %v93, %v549
  %vm619 = vcmp.le.s32.totalorder %v94, %v549
  %vm620 = vcmp.le.s32.totalorder %v95, %v549
  %vm621 = vcmp.le.s32.totalorder %v96, %v549
  %vm622 = vcmp.le.s32.totalorder %v97, %v549
  %vm623 = vcmp.le.s32.totalorder %v98, %v549
  %vm624 = vcmp.le.s32.totalorder %v99, %v549
  %vm625 = vcmp.le.s32.totalorder %v100, %v549
  %vm626 = vcmp.le.s32.totalorder %v101, %v549
  %vm627 = vcmp.le.s32.totalorder %v102, %v549
  %vm628 = vcmp.le.s32.totalorder %v103, %v549
  %vm629 = vcmp.le.s32.totalorder %v104, %v549
  %vm630 = vcmp.le.s32.totalorder %v105, %v549
  %vm631 = vcmp.le.s32.totalorder %v106, %v549
  %vm632 = vcmp.le.s32.totalorder %v107, %v549
  %vm633 = vcmp.le.s32.totalorder %v108, %v549
  %vm634 = vcmp.le.s32.totalorder %v109, %v549
  %vm635 = vcmp.le.s32.totalorder %v110, %v549
  %vm636 = vcmp.le.s32.totalorder %v111, %v549
  %vm637 = vcmp.le.s32.totalorder %v112, %v549
  %vm638 = vcmp.le.s32.totalorder %v113, %v549
  %vm639 = vcmp.le.s32.totalorder %v114, %v549
  %vm640 = vcmp.le.s32.totalorder %v115, %v549
  %vm641 = vcmp.le.s32.totalorder %v116, %v549
  %vm642 = vcmp.le.s32.totalorder %v117, %v549
  %vm643 = vcmp.le.s32.totalorder %v118, %v549
  %vm644 = vcmp.le.s32.totalorder %v119, %v549
  %vm645 = vcmp.le.s32.totalorder %v120, %v549
  %vm646 = vcmp.le.s32.totalorder %v121, %v549
  %vm647 = vcmp.le.s32.totalorder %v122, %v549
  %vm648 = vcmp.le.s32.totalorder %v123, %v549
  %vm649 = vcmp.le.s32.totalorder %v124, %v549
  %vm650 = vcmp.le.s32.totalorder %v125, %v549
  %vm651 = vcmp.le.s32.totalorder %v126, %v549
  %vm652 = vcmp.le.s32.totalorder %v127, %v549
  %vm653 = vcmp.le.s32.totalorder %v128, %v549
  %vm654 = vcmp.le.s32.totalorder %v129, %v549
  %vm655 = vcmp.le.s32.totalorder %v130, %v549
  %vm656 = vcmp.le.s32.totalorder %v131, %v549
  %vm657 = vcmp.le.s32.totalorder %v132, %v549
  %vm658 = vcmp.le.s32.totalorder %v133, %v549
  %vm659 = vcmp.le.s32.totalorder %v134, %v549
  %vm660 = vcmp.le.s32.totalorder %v135, %v549
  %vm661 = vcmp.le.s32.totalorder %v136, %v549
  %vm662 = vcmp.le.s32.totalorder %v137, %v549
  %vm663 = vcmp.le.s32.totalorder %v138, %v549
  %vm664 = vcmp.le.s32.totalorder %v139, %v549
  %vm665 = vcmp.le.s32.totalorder %v140, %v549
  %vm666 = vcmp.le.s32.totalorder %v141, %v549
  %vm667 = vcmp.le.s32.totalorder %v142, %v549
  %vm668 = vcmp.le.s32.totalorder %v143, %v549
  %vm669 = vcmp.le.s32.totalorder %v144, %v549
  %vm670 = vcmp.le.s32.totalorder %v145, %v549
  %vm671 = vcmp.le.s32.totalorder %v146, %v549
  %vm672 = vcmp.le.s32.totalorder %v147, %v549
  %vm673 = vcmp.le.s32.totalorder %v148, %v549
  %vm674 = vcmp.le.s32.totalorder %v149, %v549
  %vm675 = vcmp.le.s32.totalorder %v150, %v549
  %vm676 = vcmp.le.s32.totalorder %v151, %v549
  %vm677 = vcmp.le.s32.totalorder %v152, %v549
  %vm678 = vcmp.le.s32.totalorder %v153, %v549
  %vm679 = vcmp.le.s32.totalorder %v154, %v549
  %vm680 = vcmp.le.s32.totalorder %v155, %v549
  %vm681 = vcmp.le.s32.totalorder %v156, %v549
  %vm682 = vcmp.le.s32.totalorder %v157, %v549
  %vm683 = vcmp.le.s32.totalorder %v158, %v549
  %vm684 = vcmp.le.s32.totalorder %v159, %v549
  %vm685 = vcmp.le.s32.totalorder %v160, %v549
  %vm686 = vcmp.le.s32.totalorder %v161, %v549
  %vm687 = vcmp.le.s32.totalorder %v162, %v549
  %vm688 = vcmp.le.s32.totalorder %v163, %v549
  %vm689 = vcmp.le.s32.totalorder %v164, %v549
  %vm690 = vcmp.le.s32.totalorder %v165, %v549
  %vm691 = vcmp.le.s32.totalorder %v166, %v549
  %vm692 = vcmp.le.s32.totalorder %v167, %v549
  %vm693 = vcmp.le.s32.totalorder %v168, %v549
  %vm694 = vcmp.le.s32.totalorder %v169, %v549
  %vm695 = vcmp.le.s32.totalorder %v170, %v549
  %vm696 = vcmp.le.s32.totalorder %v171, %v549
  %vm697 = vcmp.le.s32.totalorder %v172, %v549
  %vm698 = vcmp.le.s32.totalorder %v173, %v549
  %vm699 = vcmp.le.s32.totalorder %v174, %v549
  %vm700 = vcmp.le.s32.totalorder %v175, %v549
  %vm701 = vcmp.le.s32.totalorder %v176, %v549
  %vm702 = vcmp.le.s32.totalorder %v177, %v549
  %vm703 = vcmp.le.s32.totalorder %v178, %v549
  %vm704 = vcmp.le.s32.totalorder %v179, %v549
  %vm705 = vcmp.le.s32.totalorder %v180, %v549
  %vm706 = vcmp.le.s32.totalorder %v181, %v549
  %vm707 = vcmp.le.s32.totalorder %v182, %v549
  %vm708 = vcmp.le.s32.totalorder %v183, %v549
  %vm709 = vcmp.le.s32.totalorder %v184, %v549
  %vm710 = vcmp.le.s32.totalorder %v185, %v549
  %vm711 = vcmp.le.s32.totalorder %v186, %v549
  %vm712 = vcmp.le.s32.totalorder %v187, %v549
  %vm713 = vcmp.le.s32.totalorder %v188, %v549
  %vm714 = vcmp.le.s32.totalorder %v189, %v549
  %vm715 = vcmp.le.s32.totalorder %v190, %v549
  %vm716 = vcmp.le.s32.totalorder %v191, %v549
  %vm717 = vcmp.le.s32.totalorder %v192, %v549
  %vm718 = vcmp.le.s32.totalorder %v193, %v549
  %vm719 = vcmp.le.s32.totalorder %v194, %v549
  %vm720 = vcmp.le.s32.totalorder %v195, %v549
  %vm721 = vcmp.le.s32.totalorder %v196, %v549
  %vm722 = vcmp.le.s32.totalorder %v197, %v549
  %vm723 = vcmp.le.s32.totalorder %v198, %v549
  %vm724 = vcmp.le.s32.totalorder %v199, %v549
  %vm725 = vcmp.le.s32.totalorder %v200, %v549
  %vm726 = vcmp.le.s32.totalorder %v201, %v549
  %vm727 = vcmp.le.s32.totalorder %v202, %v549
  %vm728 = vcmp.le.s32.totalorder %v203, %v549
  %vm729 = vcmp.le.s32.totalorder %v204, %v549
  %vm730 = vcmp.le.s32.totalorder %v205, %v549
  %vm731 = vcmp.le.s32.totalorder %v206, %v549
  %vm732 = vcmp.le.s32.totalorder %v207, %v549
  %vm733 = vcmp.le.s32.totalorder %v208, %v549
  %vm734 = vcmp.le.s32.totalorder %v209, %v549
  %vm735 = vcmp.le.s32.totalorder %v210, %v549
  %vm736 = vcmp.le.s32.totalorder %v211, %v549
  %vm737 = vcmp.le.s32.totalorder %v212, %v549
  %vm738 = vcmp.le.s32.totalorder %v213, %v549
  %vm739 = vcmp.le.s32.totalorder %v214, %v549
  %vm740 = vcmp.le.s32.totalorder %v215, %v549
  %vm741 = vcmp.le.s32.totalorder %v216, %v549
  %vm742 = vcmp.le.s32.totalorder %v217, %v549
  %vm743 = vcmp.le.s32.totalorder %v218, %v549
  %vm744 = vcmp.le.s32.totalorder %v219, %v549
  %vm745 = vcmp.le.s32.totalorder %v220, %v549
  %vm746 = vcmp.le.s32.totalorder %v221, %v549
  %vm747 = vcmp.le.s32.totalorder %v222, %v549
  %vm748 = vcmp.le.s32.totalorder %v223, %v549
  %vm749 = vcmp.le.s32.totalorder %v224, %v549
  %vm750 = vcmp.le.s32.totalorder %v225, %v549
  %vm751 = vcmp.le.s32.totalorder %v226, %v549
  %vm752 = vcmp.le.s32.totalorder %v227, %v549
  %vm753 = vcmp.le.s32.totalorder %v228, %v549
  %vm754 = vcmp.le.s32.totalorder %v229, %v549
  %vm755 = vcmp.le.s32.totalorder %v230, %v549
  %vm756 = vcmp.le.s32.totalorder %v231, %v549
  %vm757 = vcmp.le.s32.totalorder %v232, %v549
  %vm758 = vcmp.le.s32.totalorder %v233, %v549
  %vm759 = vcmp.le.s32.totalorder %v234, %v549
  %vm760 = vcmp.le.s32.totalorder %v235, %v549
  %vm761 = vcmp.le.s32.totalorder %v236, %v549
  %vm762 = vcmp.le.s32.totalorder %v237, %v549
  %vm763 = vcmp.le.s32.totalorder %v238, %v549
  %vm764 = vcmp.le.s32.totalorder %v239, %v549
  %vm765 = vcmp.le.s32.totalorder %v240, %v549
  %vm766 = vcmp.le.s32.totalorder %v241, %v549
  %vm767 = vcmp.le.s32.totalorder %v242, %v549
  %vm768 = vcmp.le.s32.totalorder %v243, %v549
  %vm769 = vcmp.le.s32.totalorder %v244, %v549
  %vm770 = vcmp.le.s32.totalorder %v245, %v549
  %vm771 = vcmp.le.s32.totalorder %v246, %v549
  %vm772 = vcmp.le.s32.totalorder %v247, %v549
  %vm773 = vcmp.le.s32.totalorder %v248, %v549
  %vm774 = vcmp.le.s32.totalorder %v249, %v549
  %vm775 = vcmp.le.s32.totalorder %v250, %v549
  %vm776 = vcmp.le.s32.totalorder %v251, %v549
  %vm777 = vcmp.le.s32.totalorder %v252, %v549
  %vm778 = vcmp.le.s32.totalorder %v253, %v549
  %vm779 = vcmp.le.s32.totalorder %v254, %v549
  %vm780 = vcmp.le.s32.totalorder %v255, %v549
  %vm781 = vcmp.le.s32.totalorder %v256, %v549
  %vm782 = vcmp.le.s32.totalorder %v257, %v549
  %vm783 = vcmp.le.s32.totalorder %v258, %v549
  %vm784 = vcmp.le.s32.totalorder %v259, %v549
  %vm785 = vcmp.le.s32.totalorder %v260, %v549
  %vm786 = vcmp.le.s32.totalorder %v261, %v549
  %vm787 = vcmp.le.s32.totalorder %v262, %v549
  %vm788 = vcmp.le.s32.totalorder %v263, %v549
  %vm789 = vcmp.le.s32.totalorder %v264, %v549
  %vm790 = vcmp.le.s32.totalorder %v265, %v549
  %vm791 = vcmp.le.s32.totalorder %v266, %v549
  %vm792 = vcmp.le.s32.totalorder %v267, %v549
  %vm793 = vcmp.le.s32.totalorder %v268, %v549
  %vm794 = vcmp.le.s32.totalorder %v269, %v549
  %vm795 = vcmp.le.s32.totalorder %v270, %v549
  %vm796 = vcmp.le.s32.totalorder %v271, %v549
  %vm797 = vcmp.le.s32.totalorder %v272, %v549
  %vm798 = vcmp.le.s32.totalorder %v273, %v549
  %vm799 = vcmp.le.s32.totalorder %v274, %v549
  %vm800 = vcmp.le.s32.totalorder %v275, %v549
  %vm801 = vcmp.le.s32.totalorder %v276, %v549
  %vm802 = vcmp.le.s32.totalorder %v277, %v549
  %vm803 = vcmp.le.s32.totalorder %v278, %v549
  %vm804 = vcmp.le.s32.totalorder %v279, %v549
  %vm805 = vcmp.le.s32.totalorder %v280, %v549
  %vm806 = vmand %vm290, %vm550
  %vm807 = vmand %vm291, %vm551
  %vm808 = vmand %vm292, %vm552
  %vm809 = vmand %vm293, %vm553
  %vm810 = vmand %vm294, %vm554
  %vm811 = vmand %vm295, %vm555
  %vm812 = vmand %vm296, %vm556
  %vm813 = vmand %vm297, %vm557
  %vm814 = vmand %vm298, %vm558
  %vm815 = vmand %vm299, %vm559
  %vm816 = vmand %vm300, %vm560
  %vm817 = vmand %vm301, %vm561
  %vm818 = vmand %vm302, %vm562
  %vm819 = vmand %vm303, %vm563
  %vm820 = vmand %vm304, %vm564
  %vm821 = vmand %vm305, %vm565
  %vm822 = vmand %vm306, %vm566
  %vm823 = vmand %vm307, %vm567
  %vm824 = vmand %vm308, %vm568
  %vm825 = vmand %vm309, %vm569
  %vm826 = vmand %vm310, %vm570
  %vm827 = vmand %vm311, %vm571
  %vm828 = vmand %vm312, %vm572
  %vm829 = vmand %vm313, %vm573
  %vm830 = vmand %vm314, %vm574
  %vm831 = vmand %vm315, %vm575
  %vm832 = vmand %vm316, %vm576
  %vm833 = vmand %vm317, %vm577
  %vm834 = vmand %vm318, %vm578
  %vm835 = vmand %vm319, %vm579
  %vm836 = vmand %vm320, %vm580
  %vm837 = vmand %vm321, %vm581
  %vm838 = vmand %vm322, %vm582
  %vm839 = vmand %vm323, %vm583
  %vm840 = vmand %vm324, %vm584
  %vm841 = vmand %vm325, %vm585
  %vm842 = vmand %vm326, %vm586
  %vm843 = vmand %vm327, %vm587
  %vm844 = vmand %vm328, %vm588
  %vm845 = vmand %vm329, %vm589
  %vm846 = vmand %vm330, %vm590
  %vm847 = vmand %vm331, %vm591
  %vm848 = vmand %vm332, %vm592
  %vm849 = vmand %vm333, %vm593
  %vm850 = vmand %vm334, %vm594
  %vm851 = vmand %vm335, %vm595
  %vm852 = vmand %vm336, %vm596
  %vm853 = vmand %vm337, %vm597
  %vm854 = vmand %vm338, %vm598
  %vm855 = vmand %vm339, %vm599
  %vm856 = vmand %vm340, %vm600
  %vm857 = vmand %vm341, %vm601
  %vm858 = vmand %vm342, %vm602
  %vm859 = vmand %vm343, %vm603
  %vm860 = vmand %vm344, %vm604
  %vm861 = vmand %vm345, %vm605
  %vm862 = vmand %vm346, %vm606
  %vm863 = vmand %vm347, %vm607
  %vm864 = vmand %vm348, %vm608
  %vm865 = vmand %vm349, %vm609
  %vm866 = vmand %vm350, %vm610
  %vm867 = vmand %vm351, %vm611
  %vm868 = vmand %vm352, %vm612
  %vm869 = vmand %vm353, %vm613
  %vm870 = vmand %vm354, %vm614
  %vm871 = vmand %vm355, %vm615
  %vm872 = vmand %vm356, %vm616
  %vm873 = vmand %vm357, %vm617
  %vm874 = vmand %vm358, %vm618
  %vm875 = vmand %vm359, %vm619
  %vm876 = vmand %vm360, %vm620
  %vm877 = vmand %vm361, %vm621
  %vm878 = vmand %vm362, %vm622
  %vm879 = vmand %vm363, %vm623
  %vm880 = vmand %vm364, %vm624
  %vm881 = vmand %vm365, %vm625
  %vm882 = vmand %vm366, %vm626
  %vm883 = vmand %vm367, %vm627
  %vm884 = vmand %vm368, %vm628
  %vm885 = vmand %vm369, %vm629
  %vm886 = vmand %vm370, %vm630
  %vm887 = vmand %vm371, %vm631
  %vm888 = vmand %vm372, %vm632
  %vm889 = vmand %vm373, %vm633
  %vm890 = vmand %vm374, %vm634
  %vm891 = vmand %vm375, %vm635
  %vm892 = vmand %vm376, %vm636
  %vm893 = vmand %vm377, %vm637
  %vm894 = vmand %vm378, %vm638
  %vm895 = vmand %vm379, %vm639
  %vm896 = vmand %vm380, %vm640
  %vm897 = vmand %vm381, %vm641
  %vm898 = vmand %vm382, %vm642
  %vm899 = vmand %vm383, %vm643
  %vm900 = vmand %vm384, %vm644
  %vm901 = vmand %vm385, %vm645
  %vm902 = vmand %vm386, %vm646
  %vm903 = vmand %vm387, %vm647
  %vm904 = vmand %vm388, %vm648
  %vm905 = vmand %vm389, %vm649
  %vm906 = vmand %vm390, %vm650
  %vm907 = vmand %vm391, %vm651
  %vm908 = vmand %vm392, %vm652
  %vm909 = vmand %vm393, %vm653
  %vm910 = vmand %vm394, %vm654
  %vm911 = vmand %vm395, %vm655
  %vm912 = vmand %vm396, %vm656
  %vm913 = vmand %vm397, %vm657
  %vm914 = vmand %vm398, %vm658
  %vm915 = vmand %vm399, %vm659
  %vm916 = vmand %vm400, %vm660
  %vm917 = vmand %vm401, %vm661
  %vm918 = vmand %vm402, %vm662
  %vm919 = vmand %vm403, %vm663
  %vm920 = vmand %vm404, %vm664
  %vm921 = vmand %vm405, %vm665
  %vm922 = vmand %vm406, %vm666
  %vm923 = vmand %vm407, %vm667
  %vm924 = vmand %vm408, %vm668
  %vm925 = vmand %vm409, %vm669
  %vm926 = vmand %vm410, %vm670
  %vm927 = vmand %vm411, %vm671
  %vm928 = vmand %vm412, %vm672
  %vm929 = vmand %vm413, %vm673
  %vm930 = vmand %vm414, %vm674
  %vm931 = vmand %vm415, %vm675
  %vm932 = vmand %vm416, %vm676
  %vm933 = vmand %vm417, %vm677
  %vm934 = vmand %vm418, %vm678
  %vm935 = vmand %vm419, %vm679
  %vm936 = vmand %vm420, %vm680
  %vm937 = vmand %vm421, %vm681
  %vm938 = vmand %vm422, %vm682
  %vm939 = vmand %vm423, %vm683
  %vm940 = vmand %vm424, %vm684
  %vm941 = vmand %vm425, %vm685
  %vm942 = vmand %vm426, %vm686
  %vm943 = vmand %vm427, %vm687
  %vm944 = vmand %vm428, %vm688
  %vm945 = vmand %vm429, %vm689
  %vm946 = vmand %vm430, %vm690
  %vm947 = vmand %vm431, %vm691
  %vm948 = vmand %vm432, %vm692
  %vm949 = vmand %vm433, %vm693
  %vm950 = vmand %vm434, %vm694
  %vm951 = vmand %vm435, %vm695
  %vm952 = vmand %vm436, %vm696
  %vm953 = vmand %vm437, %vm697
  %vm954 = vmand %vm438, %vm698
  %vm955 = vmand %vm439, %vm699
  %vm956 = vmand %vm440, %vm700
  %vm957 = vmand %vm441, %vm701
  %vm958 = vmand %vm442, %vm702
  %vm959 = vmand %vm443, %vm703
  %vm960 = vmand %vm444, %vm704
  %vm961 = vmand %vm445, %vm705
  %vm962 = vmand %vm446, %vm706
  %vm963 = vmand %vm447, %vm707
  %vm964 = vmand %vm448, %vm708
  %vm965 = vmand %vm449, %vm709
  %vm966 = vmand %vm450, %vm710
  %vm967 = vmand %vm451, %vm711
  %vm968 = vmand %vm452, %vm712
  %vm969 = vmand %vm453, %vm713
  %vm970 = vmand %vm454, %vm714
  %vm971 = vmand %vm455, %vm715
  %vm972 = vmand %vm456, %vm716
  %vm973 = vmand %vm457, %vm717
  %vm974 = vmand %vm458, %vm718
  %vm975 = vmand %vm459, %vm719
  %vm976 = vmand %vm460, %vm720
  %vm977 = vmand %vm461, %vm721
  %vm978 = vmand %vm462, %vm722
  %vm979 = vmand %vm463, %vm723
  %vm980 = vmand %vm464, %vm724
  %vm981 = vmand %vm465, %vm725
  %vm982 = vmand %vm466, %vm726
  %vm983 = vmand %vm467, %vm727
  %vm984 = vmand %vm468, %vm728
  %vm985 = vmand %vm469, %vm729
  %vm986 = vmand %vm470, %vm730
  %vm987 = vmand %vm471, %vm731
  %vm988 = vmand %vm472, %vm732
  %vm989 = vmand %vm473, %vm733
  %vm990 = vmand %vm474, %vm734
  %vm991 = vmand %vm475, %vm735
  %vm992 = vmand %vm476, %vm736
  %vm993 = vmand %vm477, %vm737
  %vm994 = vmand %vm478, %vm738
  %vm995 = vmand %vm479, %vm739
  %vm996 = vmand %vm480, %vm740
  %vm997 = vmand %vm481, %vm741
  %vm998 = vmand %vm482, %vm742
  %vm999 = vmand %vm483, %vm743
  %vm1000 = vmand %vm484, %vm744
  %vm1001 = vmand %vm485, %vm745
  %vm1002 = vmand %vm486, %vm746
  %vm1003 = vmand %vm487, %vm747
  %vm1004 = vmand %vm488, %vm748
  %vm1005 = vmand %vm489, %vm749
  %vm1006 = vmand %vm490, %vm750
  %vm1007 = vmand %vm491, %vm751
  %vm1008 = vmand %vm492, %vm752
  %vm1009 = vmand %vm493, %vm753
  %vm1010 = vmand %vm494, %vm754
  %vm1011 = vmand %vm495, %vm755
  %vm1012 = vmand %vm496, %vm756
  %vm1013 = vmand %vm497, %vm757
  %vm1014 = vmand %vm498, %vm758
  %vm1015 = vmand %vm499, %vm759
  %vm1016 = vmand %vm500, %vm760
  %vm1017 = vmand %vm501, %vm761
  %vm1018 = vmand %vm502, %vm762
  %vm1019 = vmand %vm503, %vm763
  %vm1020 = vmand %vm504, %vm764
  %vm1021 = vmand %vm505, %vm765
  %vm1022 = vmand %vm506, %vm766
  %vm1023 = vmand %vm507, %vm767
  %vm1024 = vmand %vm508, %vm768
  %vm1025 = vmand %vm509, %vm769
  %vm1026 = vmand %vm510, %vm770
  %vm1027 = vmand %vm511, %vm771
  %vm1028 = vmand %vm512, %vm772
  %vm1029 = vmand %vm513, %vm773
  %vm1030 = vmand %vm514, %vm774
  %vm1031 = vmand %vm515, %vm775
  %vm1032 = vmand %vm516, %vm776
  %vm1033 = vmand %vm517, %vm777
  %vm1034 = vmand %vm518, %vm778
  %vm1035 = vmand %vm519, %vm779
  %vm1036 = vmand %vm520, %vm780
  %vm1037 = vmand %vm521, %vm781
  %vm1038 = vmand %vm522, %vm782
  %vm1039 = vmand %vm523, %vm783
  %vm1040 = vmand %vm524, %vm784
  %vm1041 = vmand %vm525, %vm785
  %vm1042 = vmand %vm526, %vm786
  %vm1043 = vmand %vm527, %vm787
  %vm1044 = vmand %vm528, %vm788
  %vm1045 = vmand %vm529, %vm789
  %vm1046 = vmand %vm530, %vm790
  %vm1047 = vmand %vm531, %vm791
  %vm1048 = vmand %vm532, %vm792
  %vm1049 = vmand %vm533, %vm793
  %vm1050 = vmand %vm534, %vm794
  %vm1051 = vmand %vm535, %vm795
  %vm1052 = vmand %vm536, %vm796
  %vm1053 = vmand %vm537, %vm797
  %vm1054 = vmand %vm538, %vm798
  %vm1055 = vmand %vm539, %vm799
  %vm1056 = vmand %vm540, %vm800
  %vm1057 = vmand %vm541, %vm801
  %vm1058 = vmand %vm542, %vm802
  %vm1059 = vmand %vm543, %vm803
  %vm1060 = vmand %vm544, %vm804
  %vm1061 = vmand %vm545, %vm805
  %v1062 = vsel %vm806, 1, 0
  %v1063 = vsel %vm807, 1, 0
  %v1064 = vsel %vm808, 1, 0
  %v1065 = vsel %vm809, 1, 0
  %v1066 = vsel %vm810, 1, 0
  %v1067 = vsel %vm811, 1, 0
  %v1068 = vsel %vm812, 1, 0
  %v1069 = vsel %vm813, 1, 0
  %v1070 = vsel %vm814, 1, 0
  %v1071 = vsel %vm815, 1, 0
  %v1072 = vsel %vm816, 1, 0
  %v1073 = vsel %vm817, 1, 0
  %v1074 = vsel %vm818, 1, 0
  %v1075 = vsel %vm819, 1, 0
  %v1076 = vsel %vm820, 1, 0
  %v1077 = vsel %vm821, 1, 0
  %v1078 = vsel %vm822, 1, 0
  %v1079 = vsel %vm823, 1, 0
  %v1080 = vsel %vm824, 1, 0
  %v1081 = vsel %vm825, 1, 0
  %v1082 = vsel %vm826, 1, 0
  %v1083 = vsel %vm827, 1, 0
  %v1084 = vsel %vm828, 1, 0
  %v1085 = vsel %vm829, 1, 0
  %v1086 = vsel %vm830, 1, 0
  %v1087 = vsel %vm831, 1, 0
  %v1088 = vsel %vm832, 1, 0
  %v1089 = vsel %vm833, 1, 0
  %v1090 = vsel %vm834, 1, 0
  %v1091 = vsel %vm835, 1, 0
  %v1092 = vsel %vm836, 1, 0
  %v1093 = vsel %vm837, 1, 0
  %v1094 = vsel %vm838, 1, 0
  %v1095 = vsel %vm839, 1, 0
  %v1096 = vsel %vm840, 1, 0
  %v1097 = vsel %vm841, 1, 0
  %v1098 = vsel %vm842, 1, 0
  %v1099 = vsel %vm843, 1, 0
  %v1100 = vsel %vm844, 1, 0
  %v1101 = vsel %vm845, 1, 0
  %v1102 = vsel %vm846, 1, 0
  %v1103 = vsel %vm847, 1, 0
  %v1104 = vsel %vm848, 1, 0
  %v1105 = vsel %vm849, 1, 0
  %v1106 = vsel %vm850, 1, 0
  %v1107 = vsel %vm851, 1, 0
  %v1108 = vsel %vm852, 1, 0
  %v1109 = vsel %vm853, 1, 0
  %v1110 = vsel %vm854, 1, 0
  %v1111 = vsel %vm855, 1, 0
  %v1112 = vsel %vm856, 1, 0
  %v1113 = vsel %vm857, 1, 0
  %v1114 = vsel %vm858, 1, 0
  %v1115 = vsel %vm859, 1, 0
  %v1116 = vsel %vm860, 1, 0
  %v1117 = vsel %vm861, 1, 0
  %v1118 = vsel %vm862, 1, 0
  %v1119 = vsel %vm863, 1, 0
  %v1120 = vsel %vm864, 1, 0
  %v1121 = vsel %vm865, 1, 0
  %v1122 = vsel %vm866, 1, 0
  %v1123 = vsel %vm867, 1, 0
  %v1124 = vsel %vm868, 1, 0
  %v1125 = vsel %vm869, 1, 0
  %v1126 = vsel %vm870, 1, 0
  %v1127 = vsel %vm871, 1, 0
  %v1128 = vsel %vm872, 1, 0
  %v1129 = vsel %vm873, 1, 0
  %v1130 = vsel %vm874, 1, 0
  %v1131 = vsel %vm875, 1, 0
  %v1132 = vsel %vm876, 1, 0
  %v1133 = vsel %vm877, 1, 0
  %v1134 = vsel %vm878, 1, 0
  %v1135 = vsel %vm879, 1, 0
  %v1136 = vsel %vm880, 1, 0
  %v1137 = vsel %vm881, 1, 0
  %v1138 = vsel %vm882, 1, 0
  %v1139 = vsel %vm883, 1, 0
  %v1140 = vsel %vm884, 1, 0
  %v1141 = vsel %vm885, 1, 0
  %v1142 = vsel %vm886, 1, 0
  %v1143 = vsel %vm887, 1, 0
  %v1144 = vsel %vm888, 1, 0
  %v1145 = vsel %vm889, 1, 0
  %v1146 = vsel %vm890, 1, 0
  %v1147 = vsel %vm891, 1, 0
  %v1148 = vsel %vm892, 1, 0
  %v1149 = vsel %vm893, 1, 0
  %v1150 = vsel %vm894, 1, 0
  %v1151 = vsel %vm895, 1, 0
  %v1152 = vsel %vm896, 1, 0
  %v1153 = vsel %vm897, 1, 0
  %v1154 = vsel %vm898, 1, 0
  %v1155 = vsel %vm899, 1, 0
  %v1156 = vsel %vm900, 1, 0
  %v1157 = vsel %vm901, 1, 0
  %v1158 = vsel %vm902, 1, 0
  %v1159 = vsel %vm903, 1, 0
  %v1160 = vsel %vm904, 1, 0
  %v1161 = vsel %vm905, 1, 0
  %v1162 = vsel %vm906, 1, 0
  %v1163 = vsel %vm907, 1, 0
  %v1164 = vsel %vm908, 1, 0
  %v1165 = vsel %vm909, 1, 0
  %v1166 = vsel %vm910, 1, 0
  %v1167 = vsel %vm911, 1, 0
  %v1168 = vsel %vm912, 1, 0
  %v1169 = vsel %vm913, 1, 0
  %v1170 = vsel %vm914, 1, 0
  %v1171 = vsel %vm915, 1, 0
  %v1172 = vsel %vm916, 1, 0
  %v1173 = vsel %vm917, 1, 0
  %v1174 = vsel %vm918, 1, 0
  %v1175 = vsel %vm919, 1, 0
  %v1176 = vsel %vm920, 1, 0
  %v1177 = vsel %vm921, 1, 0
  %v1178 = vsel %vm922, 1, 0
  %v1179 = vsel %vm923, 1, 0
  %v1180 = vsel %vm924, 1, 0
  %v1181 = vsel %vm925, 1, 0
  %v1182 = vsel %vm926, 1, 0
  %v1183 = vsel %vm927, 1, 0
  %v1184 = vsel %vm928, 1, 0
  %v1185 = vsel %vm929, 1, 0
  %v1186 = vsel %vm930, 1, 0
  %v1187 = vsel %vm931, 1, 0
  %v1188 = vsel %vm932, 1, 0
  %v1189 = vsel %vm933, 1, 0
  %v1190 = vsel %vm934, 1, 0
  %v1191 = vsel %vm935, 1, 0
  %v1192 = vsel %vm936, 1, 0
  %v1193 = vsel %vm937, 1, 0
  %v1194 = vsel %vm938, 1, 0
  %v1195 = vsel %vm939, 1, 0
  %v1196 = vsel %vm940, 1, 0
  %v1197 = vsel %vm941, 1, 0
  %v1198 = vsel %vm942, 1, 0
  %v1199 = vsel %vm943, 1, 0
  %v1200 = vsel %vm944, 1, 0
  %v1201 = vsel %vm945, 1, 0
  %v1202 = vsel %vm946, 1, 0
  %v1203 = vsel %vm947, 1, 0
  %v1204 = vsel %vm948, 1, 0
  %v1205 = vsel %vm949, 1, 0
  %v1206 = vsel %vm950, 1, 0
  %v1207 = vsel %vm951, 1, 0
  %v1208 = vsel %vm952, 1, 0
  %v1209 = vsel %vm953, 1, 0
  %v1210 = vsel %vm954, 1, 0
  %v1211 = vsel %vm955, 1, 0
  %v1212 = vsel %vm956, 1, 0
  %v1213 = vsel %vm957, 1, 0
  %v1214 = vsel %vm958, 1, 0
  %v1215 = vsel %vm959, 1, 0
  %v1216 = vsel %vm960, 1, 0
  %v1217 = vsel %vm961, 1, 0
  %v1218 = vsel %vm962, 1, 0
  %v1219 = vsel %vm963, 1, 0
  %v1220 = vsel %vm964, 1, 0
  %v1221 = vsel %vm965, 1, 0
  %v1222 = vsel %vm966, 1, 0
  %v1223 = vsel %vm967, 1, 0
  %v1224 = vsel %vm968, 1, 0
  %v1225 = vsel %vm969, 1, 0
  %v1226 = vsel %vm970, 1, 0
  %v1227 = vsel %vm971, 1, 0
  %v1228 = vsel %vm972, 1, 0
  %v1229 = vsel %vm973, 1, 0
  %v1230 = vsel %vm974, 1, 0
  %v1231 = vsel %vm975, 1, 0
  %v1232 = vsel %vm976, 1, 0
  %v1233 = vsel %vm977, 1, 0
  %v1234 = vsel %vm978, 1, 0
  %v1235 = vsel %vm979, 1, 0
  %v1236 = vsel %vm980, 1, 0
  %v1237 = vsel %vm981, 1, 0
  %v1238 = vsel %vm982, 1, 0
  %v1239 = vsel %vm983, 1, 0
  %v1240 = vsel %vm984, 1, 0
  %v1241 = vsel %vm985, 1, 0
  %v1242 = vsel %vm986, 1, 0
  %v1243 = vsel %vm987, 1, 0
  %v1244 = vsel %vm988, 1, 0
  %v1245 = vsel %vm989, 1, 0
  %v1246 = vsel %vm990, 1, 0
  %v1247 = vsel %vm991, 1, 0
  %v1248 = vsel %vm992, 1, 0
  %v1249 = vsel %vm993, 1, 0
  %v1250 = vsel %vm994, 1, 0
  %v1251 = vsel %vm995, 1, 0
  %v1252 = vsel %vm996, 1, 0
  %v1253 = vsel %vm997, 1, 0
  %v1254 = vsel %vm998, 1, 0
  %v1255 = vsel %vm999, 1, 0
  %v1256 = vsel %vm1000, 1, 0
  %v1257 = vsel %vm1001, 1, 0
  %v1258 = vsel %vm1002, 1, 0
  %v1259 = vsel %vm1003, 1, 0
  %v1260 = vsel %vm1004, 1, 0
  %v1261 = vsel %vm1005, 1, 0
  %v1262 = vsel %vm1006, 1, 0
  %v1263 = vsel %vm1007, 1, 0
  %v1264 = vsel %vm1008, 1, 0
  %v1265 = vsel %vm1009, 1, 0
  %v1266 = vsel %vm1010, 1, 0
  %v1267 = vsel %vm1011, 1, 0
  %v1268 = vsel %vm1012, 1, 0
  %v1269 = vsel %vm1013, 1, 0
  %v1270 = vsel %vm1014, 1, 0
  %v1271 = vsel %vm1015, 1, 0
  %v1272 = vsel %vm1016, 1, 0
  %v1273 = vsel %vm1017, 1, 0
  %v1274 = vsel %vm1018, 1, 0
  %v1275 = vsel %vm1019, 1, 0
  %v1276 = vsel %vm1020, 1, 0
  %v1277 = vsel %vm1021, 1, 0
  %v1278 = vsel %vm1022, 1, 0
  %v1279 = vsel %vm1023, 1, 0
  %v1280 = vsel %vm1024, 1, 0
  %v1281 = vsel %vm1025, 1, 0
  %v1282 = vsel %vm1026, 1, 0
  %v1283 = vsel %vm1027, 1, 0
  %v1284 = vsel %vm1028, 1, 0
  %v1285 = vsel %vm1029, 1, 0
  %v1286 = vsel %vm1030, 1, 0
  %v1287 = vsel %vm1031, 1, 0
  %v1288 = vsel %vm1032, 1, 0
  %v1289 = vsel %vm1033, 1, 0
  %v1290 = vsel %vm1034, 1, 0
  %v1291 = vsel %vm1035, 1, 0
  %v1292 = vsel %vm1036, 1, 0
  %v1293 = vsel %vm1037, 1, 0
  %v1294 = vsel %vm1038, 1, 0
  %v1295 = vsel %vm1039, 1, 0
  %v1296 = vsel %vm1040, 1, 0
  %v1297 = vsel %vm1041, 1, 0
  %v1298 = vsel %vm1042, 1, 0
  %v1299 = vsel %vm1043, 1, 0
  %v1300 = vsel %vm1044, 1, 0
  %v1301 = vsel %vm1045, 1, 0
  %v1302 = vsel %vm1046, 1, 0
  %v1303 = vsel %vm1047, 1, 0
  %v1304 = vsel %vm1048, 1, 0
  %v1305 = vsel %vm1049, 1, 0
  %v1306 = vsel %vm1050, 1, 0
  %v1307 = vsel %vm1051, 1, 0
  %v1308 = vsel %vm1052, 1, 0
  %v1309 = vsel %vm1053, 1, 0
  %v1310 = vsel %vm1054, 1, 0
  %v1311 = vsel %vm1055, 1, 0
  %v1312 = vsel %vm1056, 1, 0
  %v1313 = vsel %vm1057, 1, 0
  %v1314 = vsel %vm1058, 1, 0
  %v1315 = vsel %vm1059, 1, 0
  %v1316 = vsel %vm1060, 1, 0
  %v1317 = vsel %vm1061, 1, 0
  %v1318 = vcvt.s32.f32 %v1062
  %v1319 = vcvt.s32.f32 %v1063
  %v1320 = vcvt.s32.f32 %v1064
  %v1321 = vcvt.s32.f32 %v1065
  %v1322 = vcvt.s32.f32 %v1066
  %v1323 = vcvt.s32.f32 %v1067
  %v1324 = vcvt.s32.f32 %v1068
  %v1325 = vcvt.s32.f32 %v1069
  %v1326 = vcvt.s32.f32 %v1070
  %v1327 = vcvt.s32.f32 %v1071
  %v1328 = vcvt.s32.f32 %v1072
  %v1329 = vcvt.s32.f32 %v1073
  %v1330 = vcvt.s32.f32 %v1074
  %v1331 = vcvt.s32.f32 %v1075
  %v1332 = vcvt.s32.f32 %v1076
  %v1333 = vcvt.s32.f32 %v1077
  %v1334 = vcvt.s32.f32 %v1078
  %v1335 = vcvt.s32.f32 %v1079
  %v1336 = vcvt.s32.f32 %v1080
  %v1337 = vcvt.s32.f32 %v1081
  %v1338 = vcvt.s32.f32 %v1082
  %v1339 = vcvt.s32.f32 %v1083
  %v1340 = vcvt.s32.f32 %v1084
  %v1341 = vcvt.s32.f32 %v1085
  %v1342 = vcvt.s32.f32 %v1086
  %v1343 = vcvt.s32.f32 %v1087
  %v1344 = vcvt.s32.f32 %v1088
  %v1345 = vcvt.s32.f32 %v1089
  %v1346 = vcvt.s32.f32 %v1090
  %v1347 = vcvt.s32.f32 %v1091
  %v1348 = vcvt.s32.f32 %v1092
  %v1349 = vcvt.s32.f32 %v1093
  %v1350 = vcvt.s32.f32 %v1094
  %v1351 = vcvt.s32.f32 %v1095
  %v1352 = vcvt.s32.f32 %v1096
  %v1353 = vcvt.s32.f32 %v1097
  %v1354 = vcvt.s32.f32 %v1098
  %v1355 = vcvt.s32.f32 %v1099
  %v1356 = vcvt.s32.f32 %v1100
  %v1357 = vcvt.s32.f32 %v1101
  %v1358 = vcvt.s32.f32 %v1102
  %v1359 = vcvt.s32.f32 %v1103
  %v1360 = vcvt.s32.f32 %v1104
  %v1361 = vcvt.s32.f32 %v1105
  %v1362 = vcvt.s32.f32 %v1106
  %v1363 = vcvt.s32.f32 %v1107
  %v1364 = vcvt.s32.f32 %v1108
  %v1365 = vcvt.s32.f32 %v1109
  %v1366 = vcvt.s32.f32 %v1110
  %v1367 = vcvt.s32.f32 %v1111
  %v1368 = vcvt.s32.f32 %v1112
  %v1369 = vcvt.s32.f32 %v1113
  %v1370 = vcvt.s32.f32 %v1114
  %v1371 = vcvt.s32.f32 %v1115
  %v1372 = vcvt.s32.f32 %v1116
  %v1373 = vcvt.s32.f32 %v1117
  %v1374 = vcvt.s32.f32 %v1118
  %v1375 = vcvt.s32.f32 %v1119
  %v1376 = vcvt.s32.f32 %v1120
  %v1377 = vcvt.s32.f32 %v1121
  %v1378 = vcvt.s32.f32 %v1122
  %v1379 = vcvt.s32.f32 %v1123
  %v1380 = vcvt.s32.f32 %v1124
  %v1381 = vcvt.s32.f32 %v1125
  %v1382 = vcvt.s32.f32 %v1126
  %v1383 = vcvt.s32.f32 %v1127
  %v1384 = vcvt.s32.f32 %v1128
  %v1385 = vcvt.s32.f32 %v1129
  %v1386 = vcvt.s32.f32 %v1130
  %v1387 = vcvt.s32.f32 %v1131
  %v1388 = vcvt.s32.f32 %v1132
  %v1389 = vcvt.s32.f32 %v1133
  %v1390 = vcvt.s32.f32 %v1134
  %v1391 = vcvt.s32.f32 %v1135
  %v1392 = vcvt.s32.f32 %v1136
  %v1393 = vcvt.s32.f32 %v1137
  %v1394 = vcvt.s32.f32 %v1138
  %v1395 = vcvt.s32.f32 %v1139
  %v1396 = vcvt.s32.f32 %v1140
  %v1397 = vcvt.s32.f32 %v1141
  %v1398 = vcvt.s32.f32 %v1142
  %v1399 = vcvt.s32.f32 %v1143
  %v1400 = vcvt.s32.f32 %v1144
  %v1401 = vcvt.s32.f32 %v1145
  %v1402 = vcvt.s32.f32 %v1146
  %v1403 = vcvt.s32.f32 %v1147
  %v1404 = vcvt.s32.f32 %v1148
  %v1405 = vcvt.s32.f32 %v1149
  %v1406 = vcvt.s32.f32 %v1150
  %v1407 = vcvt.s32.f32 %v1151
  %v1408 = vcvt.s32.f32 %v1152
  %v1409 = vcvt.s32.f32 %v1153
  %v1410 = vcvt.s32.f32 %v1154
  %v1411 = vcvt.s32.f32 %v1155
  %v1412 = vcvt.s32.f32 %v1156
  %v1413 = vcvt.s32.f32 %v1157
  %v1414 = vcvt.s32.f32 %v1158
  %v1415 = vcvt.s32.f32 %v1159
  %v1416 = vcvt.s32.f32 %v1160
  %v1417 = vcvt.s32.f32 %v1161
  %v1418 = vcvt.s32.f32 %v1162
  %v1419 = vcvt.s32.f32 %v1163
  %v1420 = vcvt.s32.f32 %v1164
  %v1421 = vcvt.s32.f32 %v1165
  %v1422 = vcvt.s32.f32 %v1166
  %v1423 = vcvt.s32.f32 %v1167
  %v1424 = vcvt.s32.f32 %v1168
  %v1425 = vcvt.s32.f32 %v1169
  %v1426 = vcvt.s32.f32 %v1170
  %v1427 = vcvt.s32.f32 %v1171
  %v1428 = vcvt.s32.f32 %v1172
  %v1429 = vcvt.s32.f32 %v1173
  %v1430 = vcvt.s32.f32 %v1174
  %v1431 = vcvt.s32.f32 %v1175
  %v1432 = vcvt.s32.f32 %v1176
  %v1433 = vcvt.s32.f32 %v1177
  %v1434 = vcvt.s32.f32 %v1178
  %v1435 = vcvt.s32.f32 %v1179
  %v1436 = vcvt.s32.f32 %v1180
  %v1437 = vcvt.s32.f32 %v1181
  %v1438 = vcvt.s32.f32 %v1182
  %v1439 = vcvt.s32.f32 %v1183
  %v1440 = vcvt.s32.f32 %v1184
  %v1441 = vcvt.s32.f32 %v1185
  %v1442 = vcvt.s32.f32 %v1186
  %v1443 = vcvt.s32.f32 %v1187
  %v1444 = vcvt.s32.f32 %v1188
  %v1445 = vcvt.s32.f32 %v1189
  %v1446 = vcvt.s32.f32 %v1190
  %v1447 = vcvt.s32.f32 %v1191
  %v1448 = vcvt.s32.f32 %v1192
  %v1449 = vcvt.s32.f32 %v1193
  %v1450 = vcvt.s32.f32 %v1194
  %v1451 = vcvt.s32.f32 %v1195
  %v1452 = vcvt.s32.f32 %v1196
  %v1453 = vcvt.s32.f32 %v1197
  %v1454 = vcvt.s32.f32 %v1198
  %v1455 = vcvt.s32.f32 %v1199
  %v1456 = vcvt.s32.f32 %v1200
  %v1457 = vcvt.s32.f32 %v1201
  %v1458 = vcvt.s32.f32 %v1202
  %v1459 = vcvt.s32.f32 %v1203
  %v1460 = vcvt.s32.f32 %v1204
  %v1461 = vcvt.s32.f32 %v1205
  %v1462 = vcvt.s32.f32 %v1206
  %v1463 = vcvt.s32.f32 %v1207
  %v1464 = vcvt.s32.f32 %v1208
  %v1465 = vcvt.s32.f32 %v1209
  %v1466 = vcvt.s32.f32 %v1210
  %v1467 = vcvt.s32.f32 %v1211
  %v1468 = vcvt.s32.f32 %v1212
  %v1469 = vcvt.s32.f32 %v1213
  %v1470 = vcvt.s32.f32 %v1214
  %v1471 = vcvt.s32.f32 %v1215
  %v1472 = vcvt.s32.f32 %v1216
  %v1473 = vcvt.s32.f32 %v1217
  %v1474 = vcvt.s32.f32 %v1218
  %v1475 = vcvt.s32.f32 %v1219
  %v1476 = vcvt.s32.f32 %v1220
  %v1477 = vcvt.s32.f32 %v1221
  %v1478 = vcvt.s32.f32 %v1222
  %v1479 = vcvt.s32.f32 %v1223
  %v1480 = vcvt.s32.f32 %v1224
  %v1481 = vcvt.s32.f32 %v1225
  %v1482 = vcvt.s32.f32 %v1226
  %v1483 = vcvt.s32.f32 %v1227
  %v1484 = vcvt.s32.f32 %v1228
  %v1485 = vcvt.s32.f32 %v1229
  %v1486 = vcvt.s32.f32 %v1230
  %v1487 = vcvt.s32.f32 %v1231
  %v1488 = vcvt.s32.f32 %v1232
  %v1489 = vcvt.s32.f32 %v1233
  %v1490 = vcvt.s32.f32 %v1234
  %v1491 = vcvt.s32.f32 %v1235
  %v1492 = vcvt.s32.f32 %v1236
  %v1493 = vcvt.s32.f32 %v1237
  %v1494 = vcvt.s32.f32 %v1238
  %v1495 = vcvt.s32.f32 %v1239
  %v1496 = vcvt.s32.f32 %v1240
  %v1497 = vcvt.s32.f32 %v1241
  %v1498 = vcvt.s32.f32 %v1242
  %v1499 = vcvt.s32.f32 %v1243
  %v1500 = vcvt.s32.f32 %v1244
  %v1501 = vcvt.s32.f32 %v1245
  %v1502 = vcvt.s32.f32 %v1246
  %v1503 = vcvt.s32.f32 %v1247
  %v1504 = vcvt.s32.f32 %v1248
  %v1505 = vcvt.s32.f32 %v1249
  %v1506 = vcvt.s32.f32 %v1250
  %v1507 = vcvt.s32.f32 %v1251
  %v1508 = vcvt.s32.f32 %v1252
  %v1509 = vcvt.s32.f32 %v1253
  %v1510 = vcvt.s32.f32 %v1254
  %v1511 = vcvt.s32.f32 %v1255
  %v1512 = vcvt.s32.f32 %v1256
  %v1513 = vcvt.s32.f32 %v1257
  %v1514 = vcvt.s32.f32 %v1258
  %v1515 = vcvt.s32.f32 %v1259
  %v1516 = vcvt.s32.f32 %v1260
  %v1517 = vcvt.s32.f32 %v1261
  %v1518 = vcvt.s32.f32 %v1262
  %v1519 = vcvt.s32.f32 %v1263
  %v1520 = vcvt.s32.f32 %v1264
  %v1521 = vcvt.s32.f32 %v1265
  %v1522 = vcvt.s32.f32 %v1266
  %v1523 = vcvt.s32.f32 %v1267
  %v1524 = vcvt.s32.f32 %v1268
  %v1525 = vcvt.s32.f32 %v1269
  %v1526 = vcvt.s32.f32 %v1270
  %v1527 = vcvt.s32.f32 %v1271
  %v1528 = vcvt.s32.f32 %v1272
  %v1529 = vcvt.s32.f32 %v1273
  %v1530 = vcvt.s32.f32 %v1274
  %v1531 = vcvt.s32.f32 %v1275
  %v1532 = vcvt.s32.f32 %v1276
  %v1533 = vcvt.s32.f32 %v1277
  %v1534 = vcvt.s32.f32 %v1278
  %v1535 = vcvt.s32.f32 %v1279
  %v1536 = vcvt.s32.f32 %v1280
  %v1537 = vcvt.s32.f32 %v1281
  %v1538 = vcvt.s32.f32 %v1282
  %v1539 = vcvt.s32.f32 %v1283
  %v1540 = vcvt.s32.f32 %v1284
  %v1541 = vcvt.s32.f32 %v1285
  %v1542 = vcvt.s32.f32 %v1286
  %v1543 = vcvt.s32.f32 %v1287
  %v1544 = vcvt.s32.f32 %v1288
  %v1545 = vcvt.s32.f32 %v1289
  %v1546 = vcvt.s32.f32 %v1290
  %v1547 = vcvt.s32.f32 %v1291
  %v1548 = vcvt.s32.f32 %v1292
  %v1549 = vcvt.s32.f32 %v1293
  %v1550 = vcvt.s32.f32 %v1294
  %v1551 = vcvt.s32.f32 %v1295
  %v1552 = vcvt.s32.f32 %v1296
  %v1553 = vcvt.s32.f32 %v1297
  %v1554 = vcvt.s32.f32 %v1298
  %v1555 = vcvt.s32.f32 %v1299
  %v1556 = vcvt.s32.f32 %v1300
  %v1557 = vcvt.s32.f32 %v1301
  %v1558 = vcvt.s32.f32 %v1302
  %v1559 = vcvt.s32.f32 %v1303
  %v1560 = vcvt.s32.f32 %v1304
  %v1561 = vcvt.s32.f32 %v1305
  %v1562 = vcvt.s32.f32 %v1306
  %v1563 = vcvt.s32.f32 %v1307
  %v1564 = vcvt.s32.f32 %v1308
  %v1565 = vcvt.s32.f32 %v1309
  %v1566 = vcvt.s32.f32 %v1310
  %v1567 = vcvt.s32.f32 %v1311
  %v1568 = vcvt.s32.f32 %v1312
  %v1569 = vcvt.s32.f32 %v1313
  %v1570 = vcvt.s32.f32 %v1314
  %v1571 = vcvt.s32.f32 %v1315
  %v1572 = vcvt.s32.f32 %v1316
  %v1573 = vcvt.s32.f32 %v1317
  %v1574 = vpack.c.bf16 %v1319, %v1318
  %v1575 = vpack.c.bf16 %v1321, %v1320
  %v1576 = vpack.c.bf16 %v1323, %v1322
  %v1577 = vpack.c.bf16 %v1325, %v1324
  %v1578 = vpack.c.bf16 %v1327, %v1326
  %v1579 = vpack.c.bf16 %v1329, %v1328
  %v1580 = vpack.c.bf16 %v1331, %v1330
  %v1581 = vpack.c.bf16 %v1333, %v1332
  %v1582 = vpack.c.bf16 %v1335, %v1334
  %v1583 = vpack.c.bf16 %v1337, %v1336
  %v1584 = vpack.c.bf16 %v1339, %v1338
  %v1585 = vpack.c.bf16 %v1341, %v1340
  %v1586 = vpack.c.bf16 %v1343, %v1342
  %v1587 = vpack.c.bf16 %v1345, %v1344
  %v1588 = vpack.c.bf16 %v1347, %v1346
  %v1589 = vpack.c.bf16 %v1349, %v1348
  %v1590 = vpack.c.bf16 %v1351, %v1350
  %v1591 = vpack.c.bf16 %v1353, %v1352
  %v1592 = vpack.c.bf16 %v1355, %v1354
  %v1593 = vpack.c.bf16 %v1357, %v1356
  %v1594 = vpack.c.bf16 %v1359, %v1358
  %v1595 = vpack.c.bf16 %v1361, %v1360
  %v1596 = vpack.c.bf16 %v1363, %v1362
  %v1597 = vpack.c.bf16 %v1365, %v1364
  %v1598 = vpack.c.bf16 %v1367, %v1366
  %v1599 = vpack.c.bf16 %v1369, %v1368
  %v1600 = vpack.c.bf16 %v1371, %v1370
  %v1601 = vpack.c.bf16 %v1373, %v1372
  %v1602 = vpack.c.bf16 %v1375, %v1374
  %v1603 = vpack.c.bf16 %v1377, %v1376
  %v1604 = vpack.c.bf16 %v1379, %v1378
  %v1605 = vpack.c.bf16 %v1381, %v1380
  %v1606 = vpack.c.bf16 %v1383, %v1382
  %v1607 = vpack.c.bf16 %v1385, %v1384
  %v1608 = vpack.c.bf16 %v1387, %v1386
  %v1609 = vpack.c.bf16 %v1389, %v1388
  %v1610 = vpack.c.bf16 %v1391, %v1390
  %v1611 = vpack.c.bf16 %v1393, %v1392
  %v1612 = vpack.c.bf16 %v1395, %v1394
  %v1613 = vpack.c.bf16 %v1397, %v1396
  %v1614 = vpack.c.bf16 %v1399, %v1398
  %v1615 = vpack.c.bf16 %v1401, %v1400
  %v1616 = vpack.c.bf16 %v1403, %v1402
  %v1617 = vpack.c.bf16 %v1405, %v1404
  %v1618 = vpack.c.bf16 %v1407, %v1406
  %v1619 = vpack.c.bf16 %v1409, %v1408
  %v1620 = vpack.c.bf16 %v1411, %v1410
  %v1621 = vpack.c.bf16 %v1413, %v1412
  %v1622 = vpack.c.bf16 %v1415, %v1414
  %v1623 = vpack.c.bf16 %v1417, %v1416
  %v1624 = vpack.c.bf16 %v1419, %v1418
  %v1625 = vpack.c.bf16 %v1421, %v1420
  %v1626 = vpack.c.bf16 %v1423, %v1422
  %v1627 = vpack.c.bf16 %v1425, %v1424
  %v1628 = vpack.c.bf16 %v1427, %v1426
  %v1629 = vpack.c.bf16 %v1429, %v1428
  %v1630 = vpack.c.bf16 %v1431, %v1430
  %v1631 = vpack.c.bf16 %v1433, %v1432
  %v1632 = vpack.c.bf16 %v1435, %v1434
  %v1633 = vpack.c.bf16 %v1437, %v1436
  %v1634 = vpack.c.bf16 %v1439, %v1438
  %v1635 = vpack.c.bf16 %v1441, %v1440
  %v1636 = vpack.c.bf16 %v1443, %v1442
  %v1637 = vpack.c.bf16 %v1445, %v1444
  %v1638 = vpack.c.bf16 %v1447, %v1446
  %v1639 = vpack.c.bf16 %v1449, %v1448
  %v1640 = vpack.c.bf16 %v1451, %v1450
  %v1641 = vpack.c.bf16 %v1453, %v1452
  %v1642 = vpack.c.bf16 %v1455, %v1454
  %v1643 = vpack.c.bf16 %v1457, %v1456
  %v1644 = vpack.c.bf16 %v1459, %v1458
  %v1645 = vpack.c.bf16 %v1461, %v1460
  %v1646 = vpack.c.bf16 %v1463, %v1462
  %v1647 = vpack.c.bf16 %v1465, %v1464
  %v1648 = vpack.c.bf16 %v1467, %v1466
  %v1649 = vpack.c.bf16 %v1469, %v1468
  %v1650 = vpack.c.bf16 %v1471, %v1470
  %v1651 = vpack.c.bf16 %v1473, %v1472
  %v1652 = vpack.c.bf16 %v1475, %v1474
  %v1653 = vpack.c.bf16 %v1477, %v1476
  %v1654 = vpack.c.bf16 %v1479, %v1478
  %v1655 = vpack.c.bf16 %v1481, %v1480
  %v1656 = vpack.c.bf16 %v1483, %v1482
  %v1657 = vpack.c.bf16 %v1485, %v1484
  %v1658 = vpack.c.bf16 %v1487, %v1486
  %v1659 = vpack.c.bf16 %v1489, %v1488
  %v1660 = vpack.c.bf16 %v1491, %v1490
  %v1661 = vpack.c.bf16 %v1493, %v1492
  %v1662 = vpack.c.bf16 %v1495, %v1494
  %v1663 = vpack.c.bf16 %v1497, %v1496
  %v1664 = vpack.c.bf16 %v1499, %v1498
  %v1665 = vpack.c.bf16 %v1501, %v1500
  %v1666 = vpack.c.bf16 %v1503, %v1502
  %v1667 = vpack.c.bf16 %v1505, %v1504
  %v1668 = vpack.c.bf16 %v1507, %v1506
  %v1669 = vpack.c.bf16 %v1509, %v1508
  %v1670 = vpack.c.bf16 %v1511, %v1510
  %v1671 = vpack.c.bf16 %v1513, %v1512
  %v1672 = vpack.c.bf16 %v1515, %v1514
  %v1673 = vpack.c.bf16 %v1517, %v1516
  %v1674 = vpack.c.bf16 %v1519, %v1518
  %v1675 = vpack.c.bf16 %v1521, %v1520
  %v1676 = vpack.c.bf16 %v1523, %v1522
  %v1677 = vpack.c.bf16 %v1525, %v1524
  %v1678 = vpack.c.bf16 %v1527, %v1526
  %v1679 = vpack.c.bf16 %v1529, %v1528
  %v1680 = vpack.c.bf16 %v1531, %v1530
  %v1681 = vpack.c.bf16 %v1533, %v1532
  %v1682 = vpack.c.bf16 %v1535, %v1534
  %v1683 = vpack.c.bf16 %v1537, %v1536
  %v1684 = vpack.c.bf16 %v1539, %v1538
  %v1685 = vpack.c.bf16 %v1541, %v1540
  %v1686 = vpack.c.bf16 %v1543, %v1542
  %v1687 = vpack.c.bf16 %v1545, %v1544
  %v1688 = vpack.c.bf16 %v1547, %v1546
  %v1689 = vpack.c.bf16 %v1549, %v1548
  %v1690 = vpack.c.bf16 %v1551, %v1550
  %v1691 = vpack.c.bf16 %v1553, %v1552
  %v1692 = vpack.c.bf16 %v1555, %v1554
  %v1693 = vpack.c.bf16 %v1557, %v1556
  %v1694 = vpack.c.bf16 %v1559, %v1558
  %v1695 = vpack.c.bf16 %v1561, %v1560
  %v1696 = vpack.c.bf16 %v1563, %v1562
  %v1697 = vpack.c.bf16 %v1565, %v1564
  %v1698 = vpack.c.bf16 %v1567, %v1566
  %v1699 = vpack.c.bf16 %v1569, %v1568
  %v1700 = vpack.c.bf16 %v1571, %v1570
  %v1701 = vpack.c.bf16 %v1573, %v1572
  %v1702 = vld [vmem:[%s2] sm:$0xff]
  %v1703 = vld [vmem:[%s2 + $0x8] sm:$0xff]
  %v1704 = vld [vmem:[%s2 + $0x10] sm:$0xff]
  %v1705 = vld [vmem:[%s2 + $0x18] sm:$0xff]
  %v1706 = vld [vmem:[%s2 + $0x20] sm:$0xff]
  %v1707 = vld [vmem:[%s2 + $0x28] sm:$0xff]
  %v1708 = vld [vmem:[%s2 + $0x30] sm:$0xff]
  %v1709 = vld [vmem:[%s2 + $0x38] sm:$0xff]
  %v1710 = vld [vmem:[%s3] sm:$0xff]
  %v1711 = vld [vmem:[%s3 + $0x8] sm:$0xff]
  %v1712 = vld [vmem:[%s3 + $0x10] sm:$0xff]
  %v1713 = vld [vmem:[%s3 + $0x18] sm:$0xff]
  %v1714 = vld [vmem:[%s3 + $0x20] sm:$0xff]
  %v1715 = vld [vmem:[%s3 + $0x28] sm:$0xff]
  %v1716 = vld [vmem:[%s3 + $0x30] sm:$0xff]
  %v1717 = vld [vmem:[%s3 + $0x38] sm:$0xff]
  %v1718 = vmul.f32 %v1702, %v1702
  %v1719 = vmul.f32 %v1703, %v1703
  %v1720 = vmul.f32 %v1704, %v1704
  %v1721 = vmul.f32 %v1705, %v1705
  %v1722 = vmul.f32 %v1706, %v1706
  %v1723 = vmul.f32 %v1707, %v1707
  %v1724 = vmul.f32 %v1708, %v1708
  %v1725 = vmul.f32 %v1709, %v1709
  %v1726 = vmul.f32 %v1710, %v1710
  %v1727 = vmul.f32 %v1711, %v1711
  %v1728 = vmul.f32 %v1712, %v1712
  %v1729 = vmul.f32 %v1713, %v1713
  %v1730 = vmul.f32 %v1714, %v1714
  %v1731 = vmul.f32 %v1715, %v1715
  %v1732 = vmul.f32 %v1716, %v1716
  %v1733 = vmul.f32 %v1717, %v1717
  %v1742 = vcombine.high %v1718, %v1718
  %v1743 = vcombine.high %v1719, %v1719
  %v1744 = vcombine.high %v1720, %v1720
  %v1745 = vcombine.high %v1721, %v1721
  %v1746 = vcombine.high %v1722, %v1722
  %v1747 = vcombine.high %v1723, %v1723
  %v1748 = vcombine.high %v1724, %v1724
  %v1749 = vcombine.high %v1725, %v1725
  %v1766 = vcombine.low %v1726, %v1726
  %v1767 = vcombine.low %v1727, %v1727
  %v1768 = vcombine.low %v1728, %v1728
  %v1769 = vcombine.low %v1729, %v1729
  %v1770 = vcombine.low %v1730, %v1730
  %v1771 = vcombine.low %v1731, %v1731
  %v1772 = vcombine.low %v1732, %v1732
  %v1773 = vcombine.low %v1733, %v1733
  %vm1782 = vcmask 1043456
  %v1783 = vsel %vm1782, %v1718, %v1766
  %v1784 = vsel %vm1782, %v1742, %v1726
  %v1785 = vsel %vm1782, %v1719, %v1767
  %v1786 = vsel %vm1782, %v1743, %v1727
  %v1787 = vsel %vm1782, %v1720, %v1768
  %v1788 = vsel %vm1782, %v1744, %v1728
  %v1789 = vsel %vm1782, %v1721, %v1769
  %v1790 = vsel %vm1782, %v1745, %v1729
  %v1791 = vsel %vm1782, %v1722, %v1770
  %v1792 = vsel %vm1782, %v1746, %v1730
  %v1793 = vsel %vm1782, %v1723, %v1771
  %v1794 = vsel %vm1782, %v1747, %v1731
  %v1795 = vsel %vm1782, %v1724, %v1772
  %v1796 = vsel %vm1782, %v1748, %v1732
  %v1797 = vsel %vm1782, %v1725, %v1773
  %v1798 = vsel %vm1782, %v1749, %v1733
  %v1799 = vpack.c.bf16 %v1783, %v1783
  %v1800 = vpack.c.bf16 %v1784, %v1784
  %v1801 = vpack.c.bf16 %v1785, %v1785
  %v1802 = vpack.c.bf16 %v1786, %v1786
  %v1803 = vpack.c.bf16 %v1787, %v1787
  %v1804 = vpack.c.bf16 %v1788, %v1788
  %v1805 = vpack.c.bf16 %v1789, %v1789
  %v1806 = vpack.c.bf16 %v1790, %v1790
  %v1807 = vpack.c.bf16 %v1791, %v1791
  %v1808 = vpack.c.bf16 %v1792, %v1792
  %v1809 = vpack.c.bf16 %v1793, %v1793
  %v1810 = vpack.c.bf16 %v1794, %v1794
  %v1811 = vpack.c.bf16 %v1795, %v1795
  %v1812 = vpack.c.bf16 %v1796, %v1796
  %v1813 = vpack.c.bf16 %v1797, %v1797
  %v1814 = vpack.c.bf16 %v1798, %v1798
  %v1815 = vld [vmem:[#allocation2] sm:$0xff]
  %1816 = vmatprep.subr.bf16.mxu0 0
  %1817 = vmatpush1.bf16.msra.mxu0 %v1574
  %1818 = vmatprep.subr.bf16.mxu0 0
  %1819 = vmatpush1.bf16.msra.mxu0 %v1575
  %1820 = vmatprep.subr.bf16.mxu0 0
  %1821 = vmatpush1.bf16.msra.mxu0 %v1576
  %1822 = vmatprep.subr.bf16.mxu0 0
  %1823 = vmatpush1.bf16.msra.mxu0 %v1577
  %1824 = vmatprep.subr.bf16.mxu0 0
  %1825 = vmatpush1.bf16.msra.mxu0 %v1578
  %1826 = vmatprep.subr.bf16.mxu0 0
  %1827 = vmatpush1.bf16.msra.mxu0 %v1579
  %1828 = vmatprep.subr.bf16.mxu0 0
  %1829 = vmatpush1.bf16.msra.mxu0 %v1580
  %1830 = vmatprep.subr.bf16.mxu0 0
  %1831 = vmatpush1.bf16.msra.mxu0 %v1581
  %1832 = vmatprep.subr.bf16.mxu0 0
  %1833 = vmatpush1.bf16.msra.mxu0 %v1582
  %1834 = vmatprep.subr.bf16.mxu0 0
  %1835 = vmatpush1.bf16.msra.mxu0 %v1583
  %1836 = vmatprep.subr.bf16.mxu0 0
  %1837 = vmatpush1.bf16.msra.mxu0 %v1584
  %1838 = vmatprep.subr.bf16.mxu0 0
  %1839 = vmatpush1.bf16.msra.mxu0 %v1585
  %1840 = vmatprep.subr.bf16.mxu0 0
  %1841 = vmatpush1.bf16.msra.mxu0 %v1586
  %1842 = vmatprep.subr.bf16.mxu0 0
  %1843 = vmatpush1.bf16.msra.mxu0 %v1587
  %1844 = vmatprep.subr.bf16.mxu0 0
  %1845 = vmatpush1.bf16.msra.mxu0 %v1588
  %1846 = vmatprep.subr.bf16.mxu0 0
  %1847 = vmatpush1.bf16.msra.mxu0 %v1589
  %1848 = vmatprep.mubr.bf16.mxu0 %v1800
  %1849 = vmatmul.mubr.bf16.gmra.mrb[0].mxu0 %v1799
  %v1850 = vpop.f32.mrb[0].mxu0
  %v1851 = vadd.f32 0.0, %v1850
  %v1852 = vpop.f32.mrb[0].mxu0
  %v1853 = vpop.f32.mrb[0].mxu0
  %v1854 = vpop.f32.mrb[0].mxu0
  %1855 = vdwg.mxu0
  %1856 = vmatprep.subr.bf16.mxu0 0
  %1857 = vmatpush1.bf16.msra.mxu0 %v1590
  %1858 = vmatprep.subr.bf16.mxu0 0
  %1859 = vmatpush1.bf16.msra.mxu0 %v1591
  %1860 = vmatprep.subr.bf16.mxu0 0
  %1861 = vmatpush1.bf16.msra.mxu0 %v1592
  %1862 = vmatprep.subr.bf16.mxu0 0
  %1863 = vmatpush1.bf16.msra.mxu0 %v1593
  %1864 = vmatprep.subr.bf16.mxu0 0
  %1865 = vmatpush1.bf16.msra.mxu0 %v1594
  %1866 = vmatprep.subr.bf16.mxu0 0
  %1867 = vmatpush1.bf16.msra.mxu0 %v1595
  %1868 = vmatprep.subr.bf16.mxu0 0
  %1869 = vmatpush1.bf16.msra.mxu0 %v1596
  %1870 = vmatprep.subr.bf16.mxu0 0
  %1871 = vmatpush1.bf16.msra.mxu0 %v1597
  %1872 = vmatprep.subr.bf16.mxu0 0
  %1873 = vmatpush1.bf16.msra.mxu0 %v1598
  %1874 = vmatprep.subr.bf16.mxu0 0
  %1875 = vmatpush1.bf16.msra.mxu0 %v1599
  %1876 = vmatprep.subr.bf16.mxu0 0
  %1877 = vmatpush1.bf16.msra.mxu0 %v1600
  %1878 = vmatprep.subr.bf16.mxu0 0
  %1879 = vmatpush1.bf16.msra.mxu0 %v1601
  %1880 = vmatprep.subr.bf16.mxu0 0
  %1881 = vmatpush1.bf16.msra.mxu0 %v1602
  %1882 = vmatprep.subr.bf16.mxu0 0
  %1883 = vmatpush1.bf16.msra.mxu0 %v1603
  %1884 = vmatprep.subr.bf16.mxu0 0
  %1885 = vmatpush1.bf16.msra.mxu0 %v1604
  %1886 = vmatprep.subr.bf16.mxu0 0
  %1887 = vmatpush1.bf16.msra.mxu0 %v1605
  %1888 = vmatprep.mubr.bf16.mxu0 %v1802
  %1889 = vmatmul.mubr.bf16.gmra.mrb[0].mxu0 %v1801
  %v1890 = vpop.f32.mrb[0].mxu0
  %v1891 = vadd.f32 %v1851, %v1890
  %v1892 = vpop.f32.mrb[0].mxu0
  %v1893 = vpop.f32.mrb[0].mxu0
  %v1894 = vpop.f32.mrb[0].mxu0
  %1895 = vdwg.mxu0
  %1896 = vmatprep.subr.bf16.mxu0 0
  %1897 = vmatpush1.bf16.msra.mxu0 %v1606
  %1898 = vmatprep.subr.bf16.mxu0 0
  %1899 = vmatpush1.bf16.msra.mxu0 %v1607
  %1900 = vmatprep.subr.bf16.mxu0 0
  %1901 = vmatpush1.bf16.msra.mxu0 %v1608
  %1902 = vmatprep.subr.bf16.mxu0 0
  %1903 = vmatpush1.bf16.msra.mxu0 %v1609
  %1904 = vmatprep.subr.bf16.mxu0 0
  %1905 = vmatpush1.bf16.msra.mxu0 %v1610
  %1906 = vmatprep.subr.bf16.mxu0 0
  %1907 = vmatpush1.bf16.msra.mxu0 %v1611
  %1908 = vmatprep.subr.bf16.mxu0 0
  %1909 = vmatpush1.bf16.msra.mxu0 %v1612
  %1910 = vmatprep.subr.bf16.mxu0 0
  %1911 = vmatpush1.bf16.msra.mxu0 %v1613
  %1912 = vmatprep.subr.bf16.mxu0 0
  %1913 = vmatpush1.bf16.msra.mxu0 %v1614
  %1914 = vmatprep.subr.bf16.mxu0 0
  %1915 = vmatpush1.bf16.msra.mxu0 %v1615
  %1916 = vmatprep.subr.bf16.mxu0 0
  %1917 = vmatpush1.bf16.msra.mxu0 %v1616
  %1918 = vmatprep.subr.bf16.mxu0 0
  %1919 = vmatpush1.bf16.msra.mxu0 %v1617
  %1920 = vmatprep.subr.bf16.mxu0 0
  %1921 = vmatpush1.bf16.msra.mxu0 %v1618
  %1922 = vmatprep.subr.bf16.mxu0 0
  %1923 = vmatpush1.bf16.msra.mxu0 %v1619
  %1924 = vmatprep.subr.bf16.mxu0 0
  %1925 = vmatpush1.bf16.msra.mxu0 %v1620
  %1926 = vmatprep.subr.bf16.mxu0 0
  %1927 = vmatpush1.bf16.msra.mxu0 %v1621
  %1928 = vmatprep.mubr.bf16.mxu0 %v1804
  %1929 = vmatmul.mubr.bf16.gmra.mrb[0].mxu0 %v1803
  %v1930 = vpop.f32.mrb[0].mxu0
  %v1931 = vadd.f32 %v1891, %v1930
  %v1932 = vpop.f32.mrb[0].mxu0
  %v1933 = vpop.f32.mrb[0].mxu0
  %v1934 = vpop.f32.mrb[0].mxu0
  %1935 = vdwg.mxu0
  %1936 = vmatprep.subr.bf16.mxu0 0
  %1937 = vmatpush1.bf16.msra.mxu0 %v1622
  %1938 = vmatprep.subr.bf16.mxu0 0
  %1939 = vmatpush1.bf16.msra.mxu0 %v1623
  %1940 = vmatprep.subr.bf16.mxu0 0
  %1941 = vmatpush1.bf16.msra.mxu0 %v1624
  %1942 = vmatprep.subr.bf16.mxu0 0
  %1943 = vmatpush1.bf16.msra.mxu0 %v1625
  %1944 = vmatprep.subr.bf16.mxu0 0
  %1945 = vmatpush1.bf16.msra.mxu0 %v1626
  %1946 = vmatprep.subr.bf16.mxu0 0
  %1947 = vmatpush1.bf16.msra.mxu0 %v1627
  %1948 = vmatprep.subr.bf16.mxu0 0
  %1949 = vmatpush1.bf16.msra.mxu0 %v1628
  %1950 = vmatprep.subr.bf16.mxu0 0
  %1951 = vmatpush1.bf16.msra.mxu0 %v1629
  %1952 = vmatprep.subr.bf16.mxu0 0
  %1953 = vmatpush1.bf16.msra.mxu0 %v1630
  %1954 = vmatprep.subr.bf16.mxu0 0
  %1955 = vmatpush1.bf16.msra.mxu0 %v1631
  %1956 = vmatprep.subr.bf16.mxu0 0
  %1957 = vmatpush1.bf16.msra.mxu0 %v1632
  %1958 = vmatprep.subr.bf16.mxu0 0
  %1959 = vmatpush1.bf16.msra.mxu0 %v1633
  %1960 = vmatprep.subr.bf16.mxu0 0
  %1961 = vmatpush1.bf16.msra.mxu0 %v1634
  %1962 = vmatprep.subr.bf16.mxu0 0
  %1963 = vmatpush1.bf16.msra.mxu0 %v1635
  %1964 = vmatprep.subr.bf16.mxu0 0
  %1965 = vmatpush1.bf16.msra.mxu0 %v1636
  %1966 = vmatprep.subr.bf16.mxu0 0
  %1967 = vmatpush1.bf16.msra.mxu0 %v1637
  %1968 = vmatprep.mubr.bf16.mxu0 %v1806
  %1969 = vmatmul.mubr.bf16.gmra.mrb[0].mxu0 %v1805
  %v1970 = vpop.f32.mrb[0].mxu0
  %v1971 = vadd.f32 %v1931, %v1970
  %v1972 = vpop.f32.mrb[0].mxu0
  %v1973 = vpop.f32.mrb[0].mxu0
  %v1974 = vpop.f32.mrb[0].mxu0
  %1975 = vdwg.mxu0
  %1976 = vmatprep.subr.bf16.mxu0 0
  %1977 = vmatpush1.bf16.msra.mxu0 %v1638
  %1978 = vmatprep.subr.bf16.mxu0 0
  %1979 = vmatpush1.bf16.msra.mxu0 %v1639
  %1980 = vmatprep.subr.bf16.mxu0 0
  %1981 = vmatpush1.bf16.msra.mxu0 %v1640
  %1982 = vmatprep.subr.bf16.mxu0 0
  %1983 = vmatpush1.bf16.msra.mxu0 %v1641
  %1984 = vmatprep.subr.bf16.mxu0 0
  %1985 = vmatpush1.bf16.msra.mxu0 %v1642
  %1986 = vmatprep.subr.bf16.mxu0 0
  %1987 = vmatpush1.bf16.msra.mxu0 %v1643
  %1988 = vmatprep.subr.bf16.mxu0 0
  %1989 = vmatpush1.bf16.msra.mxu0 %v1644
  %1990 = vmatprep.subr.bf16.mxu0 0
  %1991 = vmatpush1.bf16.msra.mxu0 %v1645
  %1992 = vmatprep.subr.bf16.mxu0 0
  %1993 = vmatpush1.bf16.msra.mxu0 %v1646
  %1994 = vmatprep.subr.bf16.mxu0 0
  %1995 = vmatpush1.bf16.msra.mxu0 %v1647
  %1996 = vmatprep.subr.bf16.mxu0 0
  %1997 = vmatpush1.bf16.msra.mxu0 %v1648
  %1998 = vmatprep.subr.bf16.mxu0 0
  %1999 = vmatpush1.bf16.msra.mxu0 %v1649
  %2000 = vmatprep.subr.bf16.mxu0 0
  %2001 = vmatpush1.bf16.msra.mxu0 %v1650
  %2002 = vmatprep.subr.bf16.mxu0 0
  %2003 = vmatpush1.bf16.msra.mxu0 %v1651
  %2004 = vmatprep.subr.bf16.mxu0 0
  %2005 = vmatpush1.bf16.msra.mxu0 %v1652
  %2006 = vmatprep.subr.bf16.mxu0 0
  %2007 = vmatpush1.bf16.msra.mxu0 %v1653
  %2008 = vmatprep.mubr.bf16.mxu0 %v1808
  %2009 = vmatmul.mubr.bf16.gmra.mrb[0].mxu0 %v1807
  %v2010 = vpop.f32.mrb[0].mxu0
  %v2011 = vadd.f32 %v1971, %v2010
  %v2012 = vpop.f32.mrb[0].mxu0
  %v2013 = vpop.f32.mrb[0].mxu0
  %v2014 = vpop.f32.mrb[0].mxu0
  %2015 = vdwg.mxu0
  %2016 = vmatprep.subr.bf16.mxu0 0
  %2017 = vmatpush1.bf16.msra.mxu0 %v1654
  %2018 = vmatprep.subr.bf16.mxu0 0
  %2019 = vmatpush1.bf16.msra.mxu0 %v1655
  %2020 = vmatprep.subr.bf16.mxu0 0
  %2021 = vmatpush1.bf16.msra.mxu0 %v1656
  %2022 = vmatprep.subr.bf16.mxu0 0
  %2023 = vmatpush1.bf16.msra.mxu0 %v1657
  %2024 = vmatprep.subr.bf16.mxu0 0
  %2025 = vmatpush1.bf16.msra.mxu0 %v1658
  %2026 = vmatprep.subr.bf16.mxu0 0
  %2027 = vmatpush1.bf16.msra.mxu0 %v1659
  %2028 = vmatprep.subr.bf16.mxu0 0
  %2029 = vmatpush1.bf16.msra.mxu0 %v1660
  %2030 = vmatprep.subr.bf16.mxu0 0
  %2031 = vmatpush1.bf16.msra.mxu0 %v1661
  %2032 = vmatprep.subr.bf16.mxu0 0
  %2033 = vmatpush1.bf16.msra.mxu0 %v1662
  %2034 = vmatprep.subr.bf16.mxu0 0
  %2035 = vmatpush1.bf16.msra.mxu0 %v1663
  %2036 = vmatprep.subr.bf16.mxu0 0
  %2037 = vmatpush1.bf16.msra.mxu0 %v1664
  %2038 = vmatprep.subr.bf16.mxu0 0
  %2039 = vmatpush1.bf16.msra.mxu0 %v1665
  %2040 = vmatprep.subr.bf16.mxu0 0
  %2041 = vmatpush1.bf16.msra.mxu0 %v1666
  %2042 = vmatprep.subr.bf16.mxu0 0
  %2043 = vmatpush1.bf16.msra.mxu0 %v1667
  %2044 = vmatprep.subr.bf16.mxu0 0
  %2045 = vmatpush1.bf16.msra.mxu0 %v1668
  %2046 = vmatprep.subr.bf16.mxu0 0
  %2047 = vmatpush1.bf16.msra.mxu0 %v1669
  %2048 = vmatprep.mubr.bf16.mxu0 %v1810
  %2049 = vmatmul.mubr.bf16.gmra.mrb[0].mxu0 %v1809
  %v2050 = vpop.f32.mrb[0].mxu0
  %v2051 = vadd.f32 %v2011, %v2050
  %v2052 = vpop.f32.mrb[0].mxu0
  %v2053 = vpop.f32.mrb[0].mxu0
  %v2054 = vpop.f32.mrb[0].mxu0
  %2055 = vdwg.mxu0
  %2056 = vmatprep.subr.bf16.mxu0 0
  %2057 = vmatpush1.bf16.msra.mxu0 %v1670
  %2058 = vmatprep.subr.bf16.mxu0 0
  %2059 = vmatpush1.bf16.msra.mxu0 %v1671
  %2060 = vmatprep.subr.bf16.mxu0 0
  %2061 = vmatpush1.bf16.msra.mxu0 %v1672
  %2062 = vmatprep.subr.bf16.mxu0 0
  %2063 = vmatpush1.bf16.msra.mxu0 %v1673
  %2064 = vmatprep.subr.bf16.mxu0 0
  %2065 = vmatpush1.bf16.msra.mxu0 %v1674
  %2066 = vmatprep.subr.bf16.mxu0 0
  %2067 = vmatpush1.bf16.msra.mxu0 %v1675
  %2068 = vmatprep.subr.bf16.mxu0 0
  %2069 = vmatpush1.bf16.msra.mxu0 %v1676
  %2070 = vmatprep.subr.bf16.mxu0 0
  %2071 = vmatpush1.bf16.msra.mxu0 %v1677
  %2072 = vmatprep.subr.bf16.mxu0 0
  %2073 = vmatpush1.bf16.msra.mxu0 %v1678
  %2074 = vmatprep.subr.bf16.mxu0 0
  %2075 = vmatpush1.bf16.msra.mxu0 %v1679
  %2076 = vmatprep.subr.bf16.mxu0 0
  %2077 = vmatpush1.bf16.msra.mxu0 %v1680
  %2078 = vmatprep.subr.bf16.mxu0 0
  %2079 = vmatpush1.bf16.msra.mxu0 %v1681
  %2080 = vmatprep.subr.bf16.mxu0 0
  %2081 = vmatpush1.bf16.msra.mxu0 %v1682
  %2082 = vmatprep.subr.bf16.mxu0 0
  %2083 = vmatpush1.bf16.msra.mxu0 %v1683
  %2084 = vmatprep.subr.bf16.mxu0 0
  %2085 = vmatpush1.bf16.msra.mxu0 %v1684
  %2086 = vmatprep.subr.bf16.mxu0 0
  %2087 = vmatpush1.bf16.msra.mxu0 %v1685
  %2088 = vmatprep.mubr.bf16.mxu0 %v1812
  %2089 = vmatmul.mubr.bf16.gmra.mrb[0].mxu0 %v1811
  %v2090 = vpop.f32.mrb[0].mxu0
  %v2091 = vadd.f32 %v2051, %v2090
  %v2092 = vpop.f32.mrb[0].mxu0
  %v2093 = vpop.f32.mrb[0].mxu0
  %v2094 = vpop.f32.mrb[0].mxu0
  %2095 = vdwg.mxu0
  %2096 = vmatprep.subr.bf16.mxu0 0
  %2097 = vmatpush1.bf16.msra.mxu0 %v1686
  %2098 = vmatprep.subr.bf16.mxu0 0
  %2099 = vmatpush1.bf16.msra.mxu0 %v1687
  %2100 = vmatprep.subr.bf16.mxu0 0
  %2101 = vmatpush1.bf16.msra.mxu0 %v1688
  %2102 = vmatprep.subr.bf16.mxu0 0
  %2103 = vmatpush1.bf16.msra.mxu0 %v1689
  %2104 = vmatprep.subr.bf16.mxu0 0
  %2105 = vmatpush1.bf16.msra.mxu0 %v1690
  %2106 = vmatprep.subr.bf16.mxu0 0
  %2107 = vmatpush1.bf16.msra.mxu0 %v1691
  %2108 = vmatprep.subr.bf16.mxu0 0
  %2109 = vmatpush1.bf16.msra.mxu0 %v1692
  %2110 = vmatprep.subr.bf16.mxu0 0
  %2111 = vmatpush1.bf16.msra.mxu0 %v1693
  %2112 = vmatprep.subr.bf16.mxu0 0
  %2113 = vmatpush1.bf16.msra.mxu0 %v1694
  %2114 = vmatprep.subr.bf16.mxu0 0
  %2115 = vmatpush1.bf16.msra.mxu0 %v1695
  %2116 = vmatprep.subr.bf16.mxu0 0
  %2117 = vmatpush1.bf16.msra.mxu0 %v1696
  %2118 = vmatprep.subr.bf16.mxu0 0
  %2119 = vmatpush1.bf16.msra.mxu0 %v1697
  %2120 = vmatprep.subr.bf16.mxu0 0
  %2121 = vmatpush1.bf16.msra.mxu0 %v1698
  %2122 = vmatprep.subr.bf16.mxu0 0
  %2123 = vmatpush1.bf16.msra.mxu0 %v1699
  %2124 = vmatprep.subr.bf16.mxu0 0
  %2125 = vmatpush1.bf16.msra.mxu0 %v1700
  %2126 = vmatprep.subr.bf16.mxu0 0
  %2127 = vmatpush1.bf16.msra.mxu0 %v1701
  %2128 = vmatprep.mubr.bf16.mxu0 %v1814
  %2129 = vmatmul.mubr.bf16.gmra.mrb[0].mxu0 %v1813
  %v2130 = vpop.f32.mrb[0].mxu0
  %v2131 = vadd.f32 %v2091, %v2130
  %v2132 = vpop.f32.mrb[0].mxu0
  %v2133 = vpop.f32.mrb[0].mxu0
  %v2134 = vpop.f32.mrb[0].mxu0
  %2135 = vdwg.mxu0
  %v2136 = vadd.f32 %v1815, %v2131
  %2137 = vst [vmem:[#allocation2] sm:$0xff] %v2136
  // Predicated region
  $region22: #{_mtat_device.1} parent=0 // pred_check
    %p2138 = pneg %p18
  $region23: #{_mtat_device.1} parent=0 // pred_check_branch
    %2140 = sbr.rel (%p2138) target = $region25
  $region24: #{_mtat_device.1} parent=0 // pred_region
    %v2141 = vld [vmem:[#allocation2] sm:$0xff]
    %v2142 = vmax.f32 %v2141, 1e-24
    %v2143 = vrcp.pop %v2142
    %2145 = vset.pattern.permute.xlu0 30
    %2146 = vperm.xlu0 %2145, %v2143
    %v2147 = vpop.permute.xlu0 %2146
    %v2149 = vmul.f32 %v2141, %v2147
    %2150 = vst [vmem:[%s4] sm:$0xff] %v2149
  $region25: #{_mtat_device.1} parent=0 // pred_fallthru
    _
  // Predicated region
  $region26: #{_mtat_device.1} parent=0 // pred_check
    _
  $region27: #{_mtat_device.1} parent=0 // pred_check_branch
    %2152 = sbr.rel (0) target = $region29
  $region28: #{_mtat_device.1} parent=0 // pred_region
    _
  $region29: #{_mtat_device.1} parent=0 // pred_fallthru
    _
  // Predicated region
  $region30: #{_mtat_device.1} parent=0 // pred_check
    _
  $region31: #{_mtat_device.1} parent=0 // pred_check_branch
    %2154 = sbr.rel (0) target = $region33
  $region32: #{_mtat_device.1} parent=0 // pred_region
    _
  $region33: #{_mtat_device.1} parent=0 // pred_fallthru
    _

</llo_original>
